<compile_context>
chip_gen: v7x
topology: tpu7x:2x2x1
jax: 0.10.0
libtpu: 0.0.40
codegen_flags: <defaults>
</compile_context>

<pallas_src>
import functools
import math

import jax
import jax.numpy as jnp
from jax.experimental import pallas as pl
from jax.experimental.pallas import tpu as pltpu


_LN_EPS = 1e-5


def _tpu_vmem_capacity_bytes():
    """Best-effort physical VMEM query; conservative 64 MiB fallback (v7x)."""
    try:
        info = pltpu.get_tpu_info()
    except Exception:
        return 64 * 1024 * 1024
    for name in ("vmem_capacity_bytes", "vmem_size_bytes", "vmem_bytes"):
        cap = getattr(info, name, None)
        if cap:
            return int(cap)
    return 64 * 1024 * 1024


_VMEM_CAP = _tpu_vmem_capacity_bytes()
# Scoped-VMEM budget: ~80% of physical, capped at 100 MiB (v5e/v6e get ~100 MiB,
# v7x gets ~51 MiB of its 64 MiB).
_VMEM_LIMIT = min(int(_VMEM_CAP * 0.8), 100 * 1024 * 1024)
# Bigger row tiles on 128-MiB-VMEM parts (v5e/v6e ~85% of HBM roofline at 512),
# smaller on 64-MiB v7x.
_TILE_M = 512 if _VMEM_CAP >= 96 * 1024 * 1024 else 256


def _row_tile(m, target=_TILE_M):
    """Largest multiple-of-8 divisor of m that is <= target.

    Prefers leaving >= 2 grid steps (so both v7x TensorCores get work) when such
    a divisor exists; falls back to the full extent for tiny / odd m."""
    divs = [d for d in range(8, min(m, target) + 1, 8) if m % d == 0]
    if not divs:
        return m
    best = max(divs)
    if best == m:
        smaller = [d for d in divs if d < m]
        if smaller:
            return max(smaller)
    return best


def _cparams(parallel_axes=1):
    return pltpu.CompilerParams(
        dimension_semantics=("parallel",) * parallel_axes,
        vmem_limit_bytes=_VMEM_LIMIT,
    )


# --- K2: fused QKV-proj + attention + output-proj + residual + LayerNorm ---- #

def _attn_block_kernel(x_ref, wq_ref, wk_ref, wv_ref, bq_ref, bk_ref, bv_ref,
                       wo_ref, bo_ref, g_ref, bt_ref, o_ref,
                       *, n_heads, d_head, scale):
    # TODO(synk): for long sequences convert to online-softmax (flash) form with
    # a KV-tile grid axis and m/l/acc scratch instead of full T x T scores.
    # TODO(synk): when T*D per batch is small, pack several batches per grid
    # step (block (G,T,D)) for lane-dense stores and larger per-step DMAs.
    x_bf = x_ref[0]                                 # [T, D] bf16 (resid + matmul in)
    T, D = x_bf.shape

    def head_body(h, proj):
        # Head-major weights: leading-axis dynamic index -> no lane slicing.
        wq = wq_ref[h]                              # [D, d_head] bf16
        wk = wk_ref[h]
        wv = wv_ref[h]
        q = jnp.dot(x_bf, wq, preferred_element_type=jnp.float32) + bq_ref[h]
        k = jnp.dot(x_bf, wk, preferred_element_type=jnp.float32) + bk_ref[h]
        v = jnp.dot(x_bf, wv, preferred_element_type=jnp.float32) + bv_ref[h]
        # Fold the 1/sqrt(d_head) scale into q before the bf16 cast.
        q = (q * scale).astype(jnp.bfloat16)
        k = k.astype(jnp.bfloat16)
        # Scores: contract last dims directly -> no in-kernel k.T relayout.
        s = jax.lax.dot_general(q, k, (((1,), (1,)), ((), ())),
                                preferred_element_type=jnp.float32)        # [T, T]
        s = s - jnp.max(s, axis=-1, keepdims=True)
        p = jnp.exp(s)
        p = p * pl.reciprocal(jnp.sum(p, axis=-1, keepdims=True), approx=True)
        attn_h = jnp.dot(p.astype(jnp.bfloat16), v.astype(jnp.bfloat16),
                         preferred_element_type=jnp.float32)               # [T, Dh]
        # Head-h contribution to the output projection (W_o stored head-major).
        # TODO(synk): when d_head % 128 == 0, concatenate heads and do a single
        # [T,D]@[D,D] matmul instead of n_heads K=d_head matmuls.
        return proj + jnp.dot(attn_h.astype(jnp.bfloat16), wo_ref[h],
                              preferred_element_type=jnp.float32)

    proj = jax.lax.fori_loop(0, n_heads, head_body,
                             jnp.zeros((T, D), jnp.float32))

    y = x_bf.astype(jnp.float32) + proj + bo_ref[...]
    mu = jnp.mean(y, axis=-1, keepdims=True)
    var = jnp.mean((y - mu) ** 2, axis=-1, keepdims=True)
    out = (y - mu) * jax.lax.rsqrt(var + _LN_EPS) * g_ref[...] + bt_ref[...]
    o_ref[0] = out.astype(o_ref.dtype)


def pallas_attention_block(x, wq, wk, wv, bq, bk, bv, wo, b_o, gamma, beta,
                           *, n_heads, d_head):
    B, T, D = x.shape
    kernel = functools.partial(_attn_block_kernel, n_heads=n_heads,
                               d_head=d_head, scale=1.0 / math.sqrt(d_head))
    const3 = lambda b: (0, 0, 0)
    const2 = lambda b: (0, 0)
    return pl.pallas_call(
        kernel,
        grid=(B,),
        in_specs=[
            pl.BlockSpec((1, T, D), lambda b: (b, 0, 0)),          # x of batch b
            pl.BlockSpec((n_heads, D, d_head), const3),            # W_q head-major
            pl.BlockSpec((n_heads, D, d_head), const3),            # W_k
            pl.BlockSpec((n_heads, D, d_head), const3),            # W_v
            pl.BlockSpec((n_heads, 1, d_head), const3),            # b_q
            pl.BlockSpec((n_heads, 1, d_head), const3),            # b_k
            pl.BlockSpec((n_heads, 1, d_head), const3),            # b_v
            pl.BlockSpec((n_heads, d_head, D), const3),            # W_o head-major
            pl.BlockSpec((1, D), const2),                          # b_o
            pl.BlockSpec((1, D), const2),                          # ln gamma
            pl.BlockSpec((1, D), const2),                          # ln beta
        ],
        out_specs=pl.BlockSpec((1, T, D), lambda b: (b, 0, 0)),
        out_shape=jax.ShapeDtypeStruct((B, T, D), jnp.bfloat16),
        compiler_params=_cparams(1),
    )(x, wq, wk, wv, bq, bk, bv, wo,
      b_o.reshape(1, D), gamma.reshape(1, D), beta.reshape(1, D))


# -------------------- K3: fused FFN + residual + LayerNorm ------------------ #

def _ffn_block_kernel(x_ref, w1_ref, b1_ref, w2_ref, b2_ref, g_ref, bt_ref, o_ref):
    x_bf = x_ref[...]                                         # [tm, D] bf16
    h = jnp.dot(x_bf, w1_ref[...], preferred_element_type=jnp.float32) + b1_ref[...]
    h = jnp.maximum(h, 0.0)
    ff = jnp.dot(h.astype(jnp.bfloat16), w2_ref[...],
                 preferred_element_type=jnp.float32) + b2_ref[...]
    y = x_bf.astype(jnp.float32) + ff
    mu = jnp.mean(y, axis=-1, keepdims=True)
    var = jnp.mean((y - mu) ** 2, axis=-1, keepdims=True)
    out = (y - mu) * jax.lax.rsqrt(var + _LN_EPS) * g_ref[...] + bt_ref[...]
    o_ref[...] = out.astype(o_ref.dtype)


def pallas_ffn_block(x, w1, b1, w2, b2, gamma, beta, *, tile_m=_TILE_M):
    M, D = x.shape
    F = w1.shape[1]
    tm = _row_tile(M, tile_m)
    # TODO(synk): on v7x with very large D, tile the F=4D hidden dim with a grid
    # axis + f32 accumulator scratch (and Buffered(1) weights) instead of keeping
    # both FFN weight matrices fully VMEM-resident.
    return pl.pallas_call(
        _ffn_block_kernel,
        grid=(M // tm,),
        in_specs=[
            pl.BlockSpec((tm, D), lambda i: (i, 0)),
            pl.BlockSpec((D, F), lambda i: (0, 0)),   # weights stay VMEM-resident
            pl.BlockSpec((1, F), lambda i: (0, 0)),
            pl.BlockSpec((F, D), lambda i: (0, 0)),
            pl.BlockSpec((1, D), lambda i: (0, 0)),
            pl.BlockSpec((1, D), lambda i: (0, 0)),
            pl.BlockSpec((1, D), lambda i: (0, 0)),
        ],
        out_specs=pl.BlockSpec((tm, D), lambda i: (i, 0)),
        out_shape=jax.ShapeDtypeStruct((M, D), jnp.bfloat16),
        compiler_params=_cparams(1),
    )(x, w1, b1.reshape(1, F), w2, b2.reshape(1, D),
      gamma.reshape(1, D), beta.reshape(1, D))


# --------------------- K4: mean over T + classifier head -------------------- #

def _head_kernel(x_ref, w1_ref, b1_ref, w2_ref, b2_ref, o_ref):
    xm = jnp.mean(x_ref[...].astype(jnp.float32), axis=1)    # torch.mean(x, dim=1)
    h = jnp.dot(xm.astype(jnp.bfloat16), w1_ref[...],
                preferred_element_type=jnp.float32) + b1_ref[...]
    h = jnp.maximum(h, 0.0)
    o_ref[...] = jnp.dot(h.astype(jnp.bfloat16), w2_ref[...],
                         preferred_element_type=jnp.float32) + b2_ref[...]


def pallas_mean_classifier(x, w1, b1, w2, b2, *, tile_b=8):
    B, T, D = x.shape
    H = w1.shape[1]
    C = w2.shape[1]
    tb = _row_tile(B, tile_b)
    return pl.pallas_call(
        _head_kernel,
        grid=(B // tb,),
        in_specs=[
            pl.BlockSpec((tb, T, D), lambda i: (i, 0, 0)),
            pl.BlockSpec((D, H), lambda i: (0, 0)),
            pl.BlockSpec((1, H), lambda i: (0, 0)),
            pl.BlockSpec((H, C), lambda i: (0, 0)),
            pl.BlockSpec((1, C), lambda i: (0, 0)),
        ],
        out_specs=pl.BlockSpec((tb, C), lambda i: (i, 0)),
        out_shape=jax.ShapeDtypeStruct((B, C), jnp.float32),
        compiler_params=_cparams(1),
    )(x, w1, b1.reshape(1, H), w2, b2.reshape(1, C))


# ------------------------- parameters & forward pass ------------------------ #

def init_params(key, vocab_size, context_size, embed_dim, n_layers, n_heads,
                hidden_dim, n_classes):
    def nrm(k, shape, dtype=jnp.float32, scale=0.02):
        return (scale * jax.random.normal(k, shape, dtype=jnp.float32)).astype(dtype)

    keys = jax.random.split(key, 3 + n_layers)
    bf16 = jnp.bfloat16          # MXU matmul weights stored in bf16 (f32 accumulate)
    params = {
        "n_heads": n_heads,
        "tok_emb": nrm(keys[0], (vocab_size, embed_dim)),
        "pos_emb": nrm(keys[1], (context_size, embed_dim)),
        "layers": [],
    }
    ff_dim = 4 * embed_dim
    for li in range(n_layers):
        lk = jax.random.split(keys[2 + li], 4)
        params["layers"].append({
            "w_qkv": nrm(lk[0], (embed_dim, 3 * embed_dim), bf16),
            "b_qkv": jnp.zeros((3 * embed_dim,), jnp.float32),
            "w_o":   nrm(lk[1], (embed_dim, embed_dim), bf16),
            "b_o":   jnp.zeros((embed_dim,), jnp.float32),
            "ln1_g": jnp.ones((embed_dim,), jnp.float32),
            "ln1_b": jnp.zeros((embed_dim,), jnp.float32),
            "w_ff1": nrm(lk[2], (embed_dim, ff_dim), bf16),
            "b_ff1": jnp.zeros((ff_dim,), jnp.float32),
            "w_ff2": nrm(lk[3], (ff_dim, embed_dim), bf16),
            "b_ff2": jnp.zeros((embed_dim,), jnp.float32),
            "ln2_g": jnp.ones((embed_dim,), jnp.float32),
            "ln2_b": jnp.zeros((embed_dim,), jnp.float32),
        })
    hk = jax.random.split(keys[2 + n_layers], 2)
    params["w_c1"] = nrm(hk[0], (embed_dim, hidden_dim), bf16)
    params["b_c1"] = jnp.zeros((hidden_dim,), jnp.float32)
    params["w_c2"] = nrm(hk[1], (hidden_dim, n_classes), bf16)
    params["b_c2"] = jnp.zeros((n_classes,), jnp.float32)
    return params


def _split_qkv_head_major(w_qkv, b_qkv, n_heads):
    """(D,3D)/(3D,) canonical layout -> head-major (H,D,dh)/(H,1,dh) layouts."""
    D = w_qkv.shape[0]
    d_head = D // n_heads
    w = jnp.transpose(w_qkv.reshape(D, 3, n_heads, d_head), (1, 2, 0, 3))
    b = b_qkv.reshape(3, n_heads, 1, d_head).astype(jnp.float32)
    return w[0], w[1], w[2], b[0], b[1], b[2]


def transformer_classifier(params, tokens):
    B, T = tokens.shape
    D = params["tok_emb"].shape[1]
    n_heads = params["n_heads"]
    d_head = D // n_heads

    # Embedding lookup + positional embedding (glue: plain JAX gather).
    x = jnp.take(params["tok_emb"], tokens, axis=0) + params["pos_emb"][:T][None, :, :]
    x = x.astype(jnp.bfloat16)                                  # bf16 activations in HBM

    for layer in params["layers"]:
        # Head-major weight layouts (done once per call; tiny XLA glue).
        wq, wk, wv, bq, bk, bv = _split_qkv_head_major(layer["w_qkv"],
                                                       layer["b_qkv"], n_heads)
        wo_hm = layer["w_o"].reshape(n_heads, d_head, D)

        # K2: QKV proj + attention + output projection + residual + LayerNorm.
        x = pallas_attention_block(x, wq, wk, wv, bq, bk, bv, wo_hm,
                                   layer["b_o"], layer["ln1_g"], layer["ln1_b"],
                                   n_heads=n_heads, d_head=d_head)   # [B,T,D] bf16

        # K3: FFN + residual + LayerNorm (row-tiled over B*T).
        x2 = pallas_ffn_block(x.reshape(B * T, D),
                              layer["w_ff1"], layer["b_ff1"],
                              layer["w_ff2"], layer["b_ff2"],
                              layer["ln2_g"], layer["ln2_b"])        # [B*T,D] bf16
        x = x2.reshape(B, T, D)                                      # free reshape

    # K4: mean over the sequence dim + classifier FeedForward.
    return pallas_mean_classifier(x, params["w_c1"], params["b_c1"],
                                  params["w_c2"], params["b_c2"])


if __name__ == "__main__":
    vocab_size = 50
    context_size = 8
    embed_dim = 32
    n_layers = 2
    n_heads = 4
    hidden_dim = 64
    n_classes = 5
    batch = 2

    key = jax.random.PRNGKey(0)
    pkey, dkey = jax.random.split(key)
    params = init_params(pkey, vocab_size, context_size, embed_dim,
                         n_layers, n_heads, hidden_dim, n_classes)
    tokens = jax.random.randint(dkey, (batch, context_size), 0, vocab_size,
                                dtype=jnp.int32)

    fwd = jax.jit(functools.partial(transformer_classifier, params))
    logits = fwd(tokens)
    jax.block_until_ready(logits)
    assert logits.shape == (batch, n_classes)
    assert bool(jnp.all(jnp.isfinite(logits)))
    print("KERNEL_OK")
</pallas_src>

<mosaic_0001>
module attributes {stable_mosaic.version = 11 : i64} {
  func.func @_head_kernel(%arg0: i32, %arg1: memref<2x8x32xbf16, #tpu.memory_space<vmem>>, %arg2: memref<32x64xbf16, #tpu.memory_space<vmem>>, %arg3: memref<1x64xf32, #tpu.memory_space<vmem>>, %arg4: memref<64x5xbf16, #tpu.memory_space<vmem>>, %arg5: memref<1x5xf32, #tpu.memory_space<vmem>>, %arg6: memref<2x5xf32, #tpu.memory_space<vmem>>) attributes {dimension_semantics = [#tpu.dimension_semantics<parallel>], iteration_bounds = array<i64: 1>, scalar_prefetch = 0 : i64, scratch_operands = 0 : i64, tpu.core_type = #tpu.core_type<tc>, window_params = [{transform_indices = @transform_0, window_bounds = array<i64: 2, 8, 32>}, {pipeline_mode = #tpu.pipeline_mode<synchronous>, transform_indices = @transform_1, window_bounds = array<i64: 32, 64>}, {pipeline_mode = #tpu.pipeline_mode<synchronous>, transform_indices = @transform_2, window_bounds = array<i64: 1, 64>}, {pipeline_mode = #tpu.pipeline_mode<synchronous>, transform_indices = @transform_3, window_bounds = array<i64: 64, 5>}, {pipeline_mode = #tpu.pipeline_mode<synchronous>, transform_indices = @transform_4, window_bounds = array<i64: 1, 5>}, {transform_indices = @transform_5, window_bounds = array<i64: 2, 5>}]} {
    %c0 = arith.constant 0 : index
    %c0_0 = arith.constant 0 : index
    %c0_1 = arith.constant 0 : index
    %0 = vector.load %arg1[%c0, %c0_0, %c0_1] : memref<2x8x32xbf16, #tpu.memory_space<vmem>>, vector<2x8x32xbf16>
    %1 = arith.extf %0 : vector<2x8x32xbf16> to vector<2x8x32xf32>
    %cst = arith.constant dense<0.000000e+00> : vector<2x32xf32>
    %2 = vector.multi_reduction <add>, %1, %cst [1] : vector<2x8x32xf32> to vector<2x32xf32>
    %cst_2 = arith.constant 8.000000e+00 : f32
    %3 = vector.broadcast %cst_2 : f32 to vector<2x32xf32>
    %4 = arith.divf %2, %3 : vector<2x32xf32>
    %5 = arith.truncf %4 : vector<2x32xf32> to vector<2x32xbf16>
    %c0_3 = arith.constant 0 : index
    %c0_4 = arith.constant 0 : index
    %6 = vector.load %arg2[%c0_3, %c0_4] : memref<32x64xbf16, #tpu.memory_space<vmem>>, vector<32x64xbf16>
    %cst_5 = arith.constant dense<0.000000e+00> : vector<2x64xf32>
    %7 = tpu.matmul %5, %6, %cst_5 {dimension_numbers = #tpu.dot_dimension_numbers<[1], [0], [0], [1], [0, 0, 1, 1], [], []>} : vector<2x32xbf16>, vector<32x64xbf16>, vector<2x64xf32> -> vector<2x64xf32>
    %c0_6 = arith.constant 0 : index
    %c0_7 = arith.constant 0 : index
    %8 = vector.load %arg3[%c0_6, %c0_7] : memref<1x64xf32, #tpu.memory_space<vmem>>, vector<1x64xf32>
    %9 = vector.broadcast %8 : vector<1x64xf32> to vector<2x64xf32>
    %10 = arith.addf %7, %9 : vector<2x64xf32>
    %cst_8 = arith.constant 0.000000e+00 : f32
    %11 = vector.broadcast %cst_8 : f32 to vector<2x64xf32>
    %12 = arith.maximumf %10, %11 : vector<2x64xf32>
    %13 = arith.truncf %12 : vector<2x64xf32> to vector<2x64xbf16>
    %c0_9 = arith.constant 0 : index
    %c0_10 = arith.constant 0 : index
    %14 = vector.load %arg4[%c0_9, %c0_10] : memref<64x5xbf16, #tpu.memory_space<vmem>>, vector<64x5xbf16>
    %cst_11 = arith.constant dense<0.000000e+00> : vector<2x5xf32>
    %15 = tpu.matmul %13, %14, %cst_11 {dimension_numbers = #tpu.dot_dimension_numbers<[1], [0], [0], [1], [0, 0, 1, 1], [], []>} : vector<2x64xbf16>, vector<64x5xbf16>, vector<2x5xf32> -> vector<2x5xf32>
    %c0_12 = arith.constant 0 : index
    %c0_13 = arith.constant 0 : index
    %16 = vector.load %arg5[%c0_12, %c0_13] : memref<1x5xf32, #tpu.memory_space<vmem>>, vector<1x5xf32>
    %17 = vector.broadcast %16 : vector<1x5xf32> to vector<2x5xf32>
    %18 = arith.addf %15, %17 : vector<2x5xf32>
    %c0_14 = arith.constant 0 : index
    %c0_15 = arith.constant 0 : index
    %19 = vector.load %arg6[%c0_14, %c0_15] : memref<2x5xf32, #tpu.memory_space<vmem>>, vector<2x5xf32>
    tpu.vector_store %arg6[%c0_14, %c0_15], %18 {strides = array<i32>} : memref<2x5xf32, #tpu.memory_space<vmem>>, vector<2x5xf32>,
    return
  }
  func.func @transform_0(%arg0: i32) -> (i32, i32, i32) {
    %c0_i32 = arith.constant 0 : i32
    %c0_i32_0 = arith.constant 0 : i32
    %c0_i32_1 = arith.constant 0 : i32
    return %arg0, %c0_i32, %c0_i32_0 : i32, i32, i32
  }
  func.func @transform_1(%arg0: i32) -> (i32, i32) {
    %c0_i32 = arith.constant 0 : i32
    %c0_i32_0 = arith.constant 0 : i32
    %c0_i32_1 = arith.constant 0 : i32
    return %c0_i32, %c0_i32_0 : i32, i32
  }
  func.func @transform_2(%arg0: i32) -> (i32, i32) {
    %c0_i32 = arith.constant 0 : i32
    %c0_i32_0 = arith.constant 0 : i32
    %c0_i32_1 = arith.constant 0 : i32
    return %c0_i32, %c0_i32_0 : i32, i32
  }
  func.func @transform_3(%arg0: i32) -> (i32, i32) {
    %c0_i32 = arith.constant 0 : i32
    %c0_i32_0 = arith.constant 0 : i32
    %c0_i32_1 = arith.constant 0 : i32
    return %c0_i32, %c0_i32_0 : i32, i32
  }
  func.func @transform_4(%arg0: i32) -> (i32, i32) {
    %c0_i32 = arith.constant 0 : i32
    %c0_i32_0 = arith.constant 0 : i32
    %c0_i32_1 = arith.constant 0 : i32
    return %c0_i32, %c0_i32_0 : i32, i32
  }
  func.func @transform_5(%arg0: i32) -> (i32, i32) {
    %c0_i32 = arith.constant 0 : i32
    %c0_i32_0 = arith.constant 0 : i32
    return %arg0, %c0_i32 : i32, i32
  }
}

module attributes {stable_mosaic.version = 11 : i64} {
  func.func @_ffn_block_kernel(%arg0: i32, %arg1: memref<8x32xbf16, #tpu.memory_space<vmem>>, %arg2: memref<32x128xbf16, #tpu.memory_space<vmem>>, %arg3: memref<1x128xf32, #tpu.memory_space<vmem>>, %arg4: memref<128x32xbf16, #tpu.memory_space<vmem>>, %arg5: memref<1x32xf32, #tpu.memory_space<vmem>>, %arg6: memref<1x32xf32, #tpu.memory_space<vmem>>, %arg7: memref<1x32xf32, #tpu.memory_space<vmem>>, %arg8: memref<8x32xbf16, #tpu.memory_space<vmem>>) attributes {dimension_semantics = [#tpu.dimension_semantics<parallel>], iteration_bounds = array<i64: 2>, scalar_prefetch = 0 : i64, scratch_operands = 0 : i64, tpu.core_type = #tpu.core_type<tc>, window_params = [{transform_indices = @transform_0, window_bounds = array<i64: 8, 32>}, {pipeline_mode = #tpu.pipeline_mode<synchronous>, transform_indices = @transform_1, window_bounds = array<i64: 32, 128>}, {pipeline_mode = #tpu.pipeline_mode<synchronous>, transform_indices = @transform_2, window_bounds = array<i64: 1, 128>}, {pipeline_mode = #tpu.pipeline_mode<synchronous>, transform_indices = @transform_3, window_bounds = array<i64: 128, 32>}, {pipeline_mode = #tpu.pipeline_mode<synchronous>, transform_indices = @transform_4, window_bounds = array<i64: 1, 32>}, {pipeline_mode = #tpu.pipeline_mode<synchronous>, transform_indices = @transform_5, window_bounds = array<i64: 1, 32>}, {pipeline_mode = #tpu.pipeline_mode<synchronous>, transform_indices = @transform_6, window_bounds = array<i64: 1, 32>}, {transform_indices = @transform_7, window_bounds = array<i64: 8, 32>}]} {
    %c0 = arith.constant 0 : index
    %c0_0 = arith.constant 0 : index
    %0 = vector.load %arg1[%c0, %c0_0] : memref<8x32xbf16, #tpu.memory_space<vmem>>, vector<8x32xbf16>
    %c0_1 = arith.constant 0 : index
    %c0_2 = arith.constant 0 : index
    %1 = vector.load %arg2[%c0_1, %c0_2] : memref<32x128xbf16, #tpu.memory_space<vmem>>, vector<32x128xbf16>
    %cst = arith.constant dense<0.000000e+00> : vector<8x128xf32>
    %2 = tpu.matmul %0, %1, %cst {dimension_numbers = #tpu.dot_dimension_numbers<[1], [0], [0], [1], [0, 0, 1, 1], [], []>} : vector<8x32xbf16>, vector<32x128xbf16>, vector<8x128xf32> -> vector<8x128xf32>
    %c0_3 = arith.constant 0 : index
    %c0_4 = arith.constant 0 : index
    %3 = vector.load %arg3[%c0_3, %c0_4] : memref<1x128xf32, #tpu.memory_space<vmem>>, vector<1x128xf32>
    %4 = vector.broadcast %3 : vector<1x128xf32> to vector<8x128xf32>
    %5 = arith.addf %2, %4 : vector<8x128xf32>
    %cst_5 = arith.constant 0.000000e+00 : f32
    %6 = vector.broadcast %cst_5 : f32 to vector<8x128xf32>
    %7 = arith.maximumf %5, %6 : vector<8x128xf32>
    %8 = arith.truncf %7 : vector<8x128xf32> to vector<8x128xbf16>
    %c0_6 = arith.constant 0 : index
    %c0_7 = arith.constant 0 : index
    %9 = vector.load %arg4[%c0_6, %c0_7] : memref<128x32xbf16, #tpu.memory_space<vmem>>, vector<128x32xbf16>
    %cst_8 = arith.constant dense<0.000000e+00> : vector<8x32xf32>
    %10 = tpu.matmul %8, %9, %cst_8 {dimension_numbers = #tpu.dot_dimension_numbers<[1], [0], [0], [1], [0, 0, 1, 1], [], []>} : vector<8x128xbf16>, vector<128x32xbf16>, vector<8x32xf32> -> vector<8x32xf32>
    %c0_9 = arith.constant 0 : index
    %c0_10 = arith.constant 0 : index
    %11 = vector.load %arg5[%c0_9, %c0_10] : memref<1x32xf32, #tpu.memory_space<vmem>>, vector<1x32xf32>
    %12 = vector.broadcast %11 : vector<1x32xf32> to vector<8x32xf32>
    %13 = arith.addf %10, %12 : vector<8x32xf32>
    %14 = arith.extf %0 : vector<8x32xbf16> to vector<8x32xf32>
    %15 = arith.addf %14, %13 : vector<8x32xf32>
    %cst_11 = arith.constant dense<0.000000e+00> : vector<8xf32>
    %16 = vector.multi_reduction <add>, %15, %cst_11 [1] : vector<8x32xf32> to vector<8xf32>
    %17 = vector.shape_cast %16 : vector<8xf32> to vector<8x1xf32>
    %cst_12 = arith.constant 3.200000e+01 : f32
    %18 = vector.broadcast %cst_12 : f32 to vector<8x1xf32>
    %19 = arith.divf %17, %18 : vector<8x1xf32>
    %20 = vector.broadcast %19 : vector<8x1xf32> to vector<8x32xf32>
    %21 = arith.subf %15, %20 : vector<8x32xf32>
    %22 = arith.mulf %21, %21 : vector<8x32xf32>
    %cst_13 = arith.constant dense<0.000000e+00> : vector<8xf32>
    %23 = vector.multi_reduction <add>, %22, %cst_13 [1] : vector<8x32xf32> to vector<8xf32>
    %24 = vector.shape_cast %23 : vector<8xf32> to vector<8x1xf32>
    %cst_14 = arith.constant 3.200000e+01 : f32
    %25 = vector.broadcast %cst_14 : f32 to vector<8x1xf32>
    %26 = arith.divf %24, %25 : vector<8x1xf32>
    %27 = vector.broadcast %19 : vector<8x1xf32> to vector<8x32xf32>
    %28 = arith.subf %15, %27 : vector<8x32xf32>
    %cst_15 = arith.constant 9.99999974E-6 : f32
    %29 = vector.broadcast %cst_15 : f32 to vector<8x1xf32>
    %30 = arith.addf %26, %29 : vector<8x1xf32>
    %31 = math.rsqrt %30 : vector<8x1xf32>
    %32 = vector.broadcast %31 : vector<8x1xf32> to vector<8x32xf32>
    %33 = arith.mulf %28, %32 : vector<8x32xf32>
    %c0_16 = arith.constant 0 : index
    %c0_17 = arith.constant 0 : index
    %34 = vector.load %arg6[%c0_16, %c0_17] : memref<1x32xf32, #tpu.memory_space<vmem>>, vector<1x32xf32>
    %35 = vector.broadcast %34 : vector<1x32xf32> to vector<8x32xf32>
    %36 = arith.mulf %33, %35 : vector<8x32xf32>
    %c0_18 = arith.constant 0 : index
    %c0_19 = arith.constant 0 : index
    %37 = vector.load %arg7[%c0_18, %c0_19] : memref<1x32xf32, #tpu.memory_space<vmem>>, vector<1x32xf32>
    %38 = vector.broadcast %37 : vector<1x32xf32> to vector<8x32xf32>
    %39 = arith.addf %36, %38 : vector<8x32xf32>
    %40 = arith.truncf %39 : vector<8x32xf32> to vector<8x32xbf16>
    %c0_20 = arith.constant 0 : index
    %c0_21 = arith.constant 0 : index
    %41 = vector.load %arg8[%c0_20, %c0_21] : memref<8x32xbf16, #tpu.memory_space<vmem>>, vector<8x32xbf16>
    tpu.vector_store %arg8[%c0_20, %c0_21], %40 {strides = array<i32>} : memref<8x32xbf16, #tpu.memory_space<vmem>>, vector<8x32xbf16>,
    return
  }
  func.func @transform_0(%arg0: i32) -> (i32, i32) {
    %c0_i32 = arith.constant 0 : i32
    %c0_i32_0 = arith.constant 0 : i32
    return %arg0, %c0_i32 : i32, i32
  }
  func.func @transform_1(%arg0: i32) -> (i32, i32) {
    %c0_i32 = arith.constant 0 : i32
    %c0_i32_0 = arith.constant 0 : i32
    %c0_i32_1 = arith.constant 0 : i32
    return %c0_i32, %c0_i32_0 : i32, i32
  }
  func.func @transform_2(%arg0: i32) -> (i32, i32) {
    %c0_i32 = arith.constant 0 : i32
    %c0_i32_0 = arith.constant 0 : i32
    %c0_i32_1 = arith.constant 0 : i32
    return %c0_i32, %c0_i32_0 : i32, i32
  }
  func.func @transform_3(%arg0: i32) -> (i32, i32) {
    %c0_i32 = arith.constant 0 : i32
    %c0_i32_0 = arith.constant 0 : i32
    %c0_i32_1 = arith.constant 0 : i32
    return %c0_i32, %c0_i32_0 : i32, i32
  }
  func.func @transform_4(%arg0: i32) -> (i32, i32) {
    %c0_i32 = arith.constant 0 : i32
    %c0_i32_0 = arith.constant 0 : i32
    %c0_i32_1 = arith.constant 0 : i32
    return %c0_i32, %c0_i32_0 : i32, i32
  }
  func.func @transform_5(%arg0: i32) -> (i32, i32) {
    %c0_i32 = arith.constant 0 : i32
    %c0_i32_0 = arith.constant 0 : i32
    %c0_i32_1 = arith.constant 0 : i32
    return %c0_i32, %c0_i32_0 : i32, i32
  }
  func.func @transform_6(%arg0: i32) -> (i32, i32) {
    %c0_i32 = arith.constant 0 : i32
    %c0_i32_0 = arith.constant 0 : i32
    %c0_i32_1 = arith.constant 0 : i32
    return %c0_i32, %c0_i32_0 : i32, i32
  }
  func.func @transform_7(%arg0: i32) -> (i32, i32) {
    %c0_i32 = arith.constant 0 : i32
    %c0_i32_0 = arith.constant 0 : i32
    return %arg0, %c0_i32 : i32, i32
  }
}

module attributes {stable_mosaic.version = 11 : i64} {
  func.func @_attn_block_kernel(%arg0: i32, %arg1: memref<1x8x32xbf16, #tpu.memory_space<vmem>>, %arg2: memref<4x32x8xbf16, #tpu.memory_space<vmem>>, %arg3: memref<4x32x8xbf16, #tpu.memory_space<vmem>>, %arg4: memref<4x32x8xbf16, #tpu.memory_space<vmem>>, %arg5: memref<4x1x8xf32, #tpu.memory_space<vmem>>, %arg6: memref<4x1x8xf32, #tpu.memory_space<vmem>>, %arg7: memref<4x1x8xf32, #tpu.memory_space<vmem>>, %arg8: memref<4x8x32xbf16, #tpu.memory_space<vmem>>, %arg9: memref<1x32xf32, #tpu.memory_space<vmem>>, %arg10: memref<1x32xf32, #tpu.memory_space<vmem>>, %arg11: memref<1x32xf32, #tpu.memory_space<vmem>>, %arg12: memref<1x8x32xbf16, #tpu.memory_space<vmem>>) attributes {dimension_semantics = [#tpu.dimension_semantics<parallel>], iteration_bounds = array<i64: 2>, scalar_prefetch = 0 : i64, scratch_operands = 0 : i64, tpu.core_type = #tpu.core_type<tc>, window_params = [{transform_indices = @transform_0, window_bounds = array<i64: 1, 8, 32>}, {pipeline_mode = #tpu.pipeline_mode<synchronous>, transform_indices = @transform_1, window_bounds = array<i64: 4, 32, 8>}, {pipeline_mode = #tpu.pipeline_mode<synchronous>, transform_indices = @transform_2, window_bounds = array<i64: 4, 32, 8>}, {pipeline_mode = #tpu.pipeline_mode<synchronous>, transform_indices = @transform_3, window_bounds = array<i64: 4, 32, 8>}, {pipeline_mode = #tpu.pipeline_mode<synchronous>, transform_indices = @transform_4, window_bounds = array<i64: 4, 1, 8>}, {pipeline_mode = #tpu.pipeline_mode<synchronous>, transform_indices = @transform_5, window_bounds = array<i64: 4, 1, 8>}, {pipeline_mode = #tpu.pipeline_mode<synchronous>, transform_indices = @transform_6, window_bounds = array<i64: 4, 1, 8>}, {pipeline_mode = #tpu.pipeline_mode<synchronous>, transform_indices = @transform_7, window_bounds = array<i64: 4, 8, 32>}, {pipeline_mode = #tpu.pipeline_mode<synchronous>, transform_indices = @transform_8, window_bounds = array<i64: 1, 32>}, {pipeline_mode = #tpu.pipeline_mode<synchronous>, transform_indices = @transform_9, window_bounds = array<i64: 1, 32>}, {pipeline_mode = #tpu.pipeline_mode<synchronous>, transform_indices = @transform_10, window_bounds = array<i64: 1, 32>}, {transform_indices = @transform_11, window_bounds = array<i64: 1, 8, 32>}]} {
    %c0 = arith.constant 0 : index
    %c0_0 = arith.constant 0 : index
    %c0_1 = arith.constant 0 : index
    %0 = vector.load %arg1[%c0, %c0_0, %c0_1] : memref<1x8x32xbf16, #tpu.memory_space<vmem>>, vector<1x8x32xbf16>
    %1 = vector.shape_cast %0 : vector<1x8x32xbf16> to vector<8x32xbf16>
    %cst = arith.constant 0.000000e+00 : f32
    %2 = vector.broadcast %cst : f32 to vector<8x32xf32>
    %c0_i32 = arith.constant 0 : i32
    %c4_i32 = arith.constant 4 : i32
    %3 = arith.addi %c0_i32, %c4_i32 : i32
    %c1_i32 = arith.constant 1 : i32
    %4 = scf.for %arg13 = %c0_i32 to %3 step %c1_i32 iter_args(%arg14 = %2) -> (vector<8x32xf32>)  : i32 {
      %38 = arith.index_cast %arg13 : i32 to index
      %c0_17 = arith.constant 0 : index
      %c0_18 = arith.constant 0 : index
      %39 = vector.load %arg2[%38, %c0_17, %c0_18] : memref<4x32x8xbf16, #tpu.memory_space<vmem>>, vector<1x32x8xbf16>
      %40 = vector.shape_cast %39 : vector<1x32x8xbf16> to vector<32x8xbf16>
      %41 = arith.index_cast %arg13 : i32 to index
      %c0_19 = arith.constant 0 : index
      %c0_20 = arith.constant 0 : index
      %42 = vector.load %arg3[%41, %c0_19, %c0_20] : memref<4x32x8xbf16, #tpu.memory_space<vmem>>, vector<1x32x8xbf16>
      %43 = vector.shape_cast %42 : vector<1x32x8xbf16> to vector<32x8xbf16>
      %44 = arith.index_cast %arg13 : i32 to index
      %c0_21 = arith.constant 0 : index
      %c0_22 = arith.constant 0 : index
      %45 = vector.load %arg4[%44, %c0_21, %c0_22] : memref<4x32x8xbf16, #tpu.memory_space<vmem>>, vector<1x32x8xbf16>
      %46 = vector.shape_cast %45 : vector<1x32x8xbf16> to vector<32x8xbf16>
      %cst_23 = arith.constant dense<0.000000e+00> : vector<8x8xf32>
      %47 = tpu.matmul %1, %40, %cst_23 {dimension_numbers = #tpu.dot_dimension_numbers<[1], [0], [0], [1], [0, 0, 1, 1], [], []>} : vector<8x32xbf16>, vector<32x8xbf16>, vector<8x8xf32> -> vector<8x8xf32>
      %48 = arith.index_cast %arg13 : i32 to index
      %c0_24 = arith.constant 0 : index
      %c0_25 = arith.constant 0 : index
      %49 = vector.load %arg5[%48, %c0_24, %c0_25] : memref<4x1x8xf32, #tpu.memory_space<vmem>>, vector<1x1x8xf32>
      %50 = vector.shape_cast %49 : vector<1x1x8xf32> to vector<1x8xf32>
      %51 = vector.broadcast %50 : vector<1x8xf32> to vector<8x8xf32>
      %52 = arith.addf %47, %51 : vector<8x8xf32>
      %cst_26 = arith.constant dense<0.000000e+00> : vector<8x8xf32>
      %53 = tpu.matmul %1, %43, %cst_26 {dimension_numbers = #tpu.dot_dimension_numbers<[1], [0], [0], [1], [0, 0, 1, 1], [], []>} : vector<8x32xbf16>, vector<32x8xbf16>, vector<8x8xf32> -> vector<8x8xf32>
      %54 = arith.index_cast %arg13 : i32 to index
      %c0_27 = arith.constant 0 : index
      %c0_28 = arith.constant 0 : index
      %55 = vector.load %arg6[%54, %c0_27, %c0_28] : memref<4x1x8xf32, #tpu.memory_space<vmem>>, vector<1x1x8xf32>
      %56 = vector.shape_cast %55 : vector<1x1x8xf32> to vector<1x8xf32>
      %57 = vector.broadcast %56 : vector<1x8xf32> to vector<8x8xf32>
      %58 = arith.addf %53, %57 : vector<8x8xf32>
      %cst_29 = arith.constant dense<0.000000e+00> : vector<8x8xf32>
      %59 = tpu.matmul %1, %46, %cst_29 {dimension_numbers = #tpu.dot_dimension_numbers<[1], [0], [0], [1], [0, 0, 1, 1], [], []>} : vector<8x32xbf16>, vector<32x8xbf16>, vector<8x8xf32> -> vector<8x8xf32>
      %60 = arith.index_cast %arg13 : i32 to index
      %c0_30 = arith.constant 0 : index
      %c0_31 = arith.constant 0 : index
      %61 = vector.load %arg7[%60, %c0_30, %c0_31] : memref<4x1x8xf32, #tpu.memory_space<vmem>>, vector<1x1x8xf32>
      %62 = vector.shape_cast %61 : vector<1x1x8xf32> to vector<1x8xf32>
      %63 = vector.broadcast %62 : vector<1x8xf32> to vector<8x8xf32>
      %64 = arith.addf %59, %63 : vector<8x8xf32>
      %cst_32 = arith.constant 0.353553385 : f32
      %65 = vector.broadcast %cst_32 : f32 to vector<8x8xf32>
      %66 = arith.mulf %52, %65 : vector<8x8xf32>
      %67 = arith.truncf %66 : vector<8x8xf32> to vector<8x8xbf16>
      %68 = arith.truncf %58 : vector<8x8xf32> to vector<8x8xbf16>
      %cst_33 = arith.constant dense<0.000000e+00> : vector<8x8xf32>
      %69 = tpu.matmul %67, %68, %cst_33 {dimension_numbers = #tpu.dot_dimension_numbers<[1], [1], [0], [0], [0, 0, 1, 0], [], []>} : vector<8x8xbf16>, vector<8x8xbf16>, vector<8x8xf32> -> vector<8x8xf32>
      %cst_34 = arith.constant dense<0xFF800000> : vector<8xf32>
      %70 = vector.multi_reduction <maximumf>, %69, %cst_34 [1] : vector<8x8xf32> to vector<8xf32>
      %71 = vector.shape_cast %70 : vector<8xf32> to vector<8x1xf32>
      %72 = vector.broadcast %71 : vector<8x1xf32> to vector<8x8xf32>
      %73 = arith.subf %69, %72 : vector<8x8xf32>
      %74 = math.exp %73 : vector<8x8xf32>
      %cst_35 = arith.constant dense<0.000000e+00> : vector<8xf32>
      %75 = vector.multi_reduction <add>, %74, %cst_35 [1] : vector<8x8xf32> to vector<8xf32>
      %76 = vector.shape_cast %75 : vector<8xf32> to vector<8x1xf32>
      %77 = tpu.reciprocal %76 {approx = true} : vector<8x1xf32> -> vector<8x1xf32>
      %78 = vector.broadcast %77 : vector<8x1xf32> to vector<8x8xf32>
      %79 = arith.mulf %74, %78 : vector<8x8xf32>
      %80 = arith.truncf %79 : vector<8x8xf32> to vector<8x8xbf16>
      %81 = arith.truncf %64 : vector<8x8xf32> to vector<8x8xbf16>
      %cst_36 = arith.constant dense<0.000000e+00> : vector<8x8xf32>
      %82 = tpu.matmul %80, %81, %cst_36 {dimension_numbers = #tpu.dot_dimension_numbers<[1], [0], [0], [1], [0, 0, 1, 1], [], []>} : vector<8x8xbf16>, vector<8x8xbf16>, vector<8x8xf32> -> vector<8x8xf32>
      %83 = arith.truncf %82 : vector<8x8xf32> to vector<8x8xbf16>
      %84 = arith.index_cast %arg13 : i32 to index
      %c0_37 = arith.constant 0 : index
      %c0_38 = arith.constant 0 : index
      %85 = vector.load %arg8[%84, %c0_37, %c0_38] : memref<4x8x32xbf16, #tpu.memory_space<vmem>>, vector<1x8x32xbf16>
      %86 = vector.shape_cast %85 : vector<1x8x32xbf16> to vector<8x32xbf16>
      %cst_39 = arith.constant dense<0.000000e+00> : vector<8x32xf32>
      %87 = tpu.matmul %83, %86, %cst_39 {dimension_numbers = #tpu.dot_dimension_numbers<[1], [0], [0], [1], [0, 0, 1, 1], [], []>} : vector<8x8xbf16>, vector<8x32xbf16>, vector<8x32xf32> -> vector<8x32xf32>
      %88 = arith.addf %arg14, %87 : vector<8x32xf32>
      scf.yield %88 : vector<8x32xf32>
    }
    %c4_i32_2 = arith.constant 4 : i32
    %5 = arith.extf %1 : vector<8x32xbf16> to vector<8x32xf32>
    %6 = arith.addf %5, %4 : vector<8x32xf32>
    %c0_3 = arith.constant 0 : index
    %c0_4 = arith.constant 0 : index
    %7 = vector.load %arg9[%c0_3, %c0_4] : memref<1x32xf32, #tpu.memory_space<vmem>>, vector<1x32xf32>
    %8 = vector.broadcast %7 : vector<1x32xf32> to vector<8x32xf32>
    %9 = arith.addf %6, %8 : vector<8x32xf32>
    %cst_5 = arith.constant dense<0.000000e+00> : vector<8xf32>
    %10 = vector.multi_reduction <add>, %9, %cst_5 [1] : vector<8x32xf32> to vector<8xf32>
    %11 = vector.shape_cast %10 : vector<8xf32> to vector<8x1xf32>
    %cst_6 = arith.constant 3.200000e+01 : f32
    %12 = vector.broadcast %cst_6 : f32 to vector<8x1xf32>
    %13 = arith.divf %11, %12 : vector<8x1xf32>
    %14 = vector.broadcast %13 : vector<8x1xf32> to vector<8x32xf32>
    %15 = arith.subf %9, %14 : vector<8x32xf32>
    %16 = arith.mulf %15, %15 : vector<8x32xf32>
    %cst_7 = arith.constant dense<0.000000e+00> : vector<8xf32>
    %17 = vector.multi_reduction <add>, %16, %cst_7 [1] : vector<8x32xf32> to vector<8xf32>
    %18 = vector.shape_cast %17 : vector<8xf32> to vector<8x1xf32>
    %cst_8 = arith.constant 3.200000e+01 : f32
    %19 = vector.broadcast %cst_8 : f32 to vector<8x1xf32>
    %20 = arith.divf %18, %19 : vector<8x1xf32>
    %21 = vector.broadcast %13 : vector<8x1xf32> to vector<8x32xf32>
    %22 = arith.subf %9, %21 : vector<8x32xf32>
    %cst_9 = arith.constant 9.99999974E-6 : f32
    %23 = vector.broadcast %cst_9 : f32 to vector<8x1xf32>
    %24 = arith.addf %20, %23 : vector<8x1xf32>
    %25 = math.rsqrt %24 : vector<8x1xf32>
    %26 = vector.broadcast %25 : vector<8x1xf32> to vector<8x32xf32>
    %27 = arith.mulf %22, %26 : vector<8x32xf32>
    %c0_10 = arith.constant 0 : index
    %c0_11 = arith.constant 0 : index
    %28 = vector.load %arg10[%c0_10, %c0_11] : memref<1x32xf32, #tpu.memory_space<vmem>>, vector<1x32xf32>
    %29 = vector.broadcast %28 : vector<1x32xf32> to vector<8x32xf32>
    %30 = arith.mulf %27, %29 : vector<8x32xf32>
    %c0_12 = arith.constant 0 : index
    %c0_13 = arith.constant 0 : index
    %31 = vector.load %arg11[%c0_12, %c0_13] : memref<1x32xf32, #tpu.memory_space<vmem>>, vector<1x32xf32>
    %32 = vector.broadcast %31 : vector<1x32xf32> to vector<8x32xf32>
    %33 = arith.addf %30, %32 : vector<8x32xf32>
    %34 = arith.truncf %33 : vector<8x32xf32> to vector<8x32xbf16>
    %c0_14 = arith.constant 0 : index
    %c0_15 = arith.constant 0 : index
    %c0_16 = arith.constant 0 : index
    %35 = vector.load %arg12[%c0_14, %c0_15, %c0_16] : memref<1x8x32xbf16, #tpu.memory_space<vmem>>, vector<1x8x32xbf16>
    %36 = vector.shape_cast %35 : vector<1x8x32xbf16> to vector<8x32xbf16>
    %37 = vector.shape_cast %34 : vector<8x32xbf16> to vector<1x8x32xbf16>
    tpu.vector_store %arg12[%c0_14, %c0_15, %c0_16], %37 {strides = array<i32>} : memref<1x8x32xbf16, #tpu.memory_space<vmem>>, vector<1x8x32xbf16>,
    return
  }
  func.func @transform_0(%arg0: i32) -> (i32, i32, i32) {
    %c0_i32 = arith.constant 0 : i32
    %c0_i32_0 = arith.constant 0 : i32
    %c0_i32_1 = arith.constant 0 : i32
    return %arg0, %c0_i32, %c0_i32_0 : i32, i32, i32
  }
  func.func @transform_1(%arg0: i32) -> (i32, i32, i32) {
    %c0_i32 = arith.constant 0 : i32
    %c0_i32_0 = arith.constant 0 : i32
    %c0_i32_1 = arith.constant 0 : i32
    %c0_i32_2 = arith.constant 0 : i32
    return %c0_i32, %c0_i32_0, %c0_i32_1 : i32, i32, i32
  }
  func.func @transform_2(%arg0: i32) -> (i32, i32, i32) {
    %c0_i32 = arith.constant 0 : i32
    %c0_i32_0 = arith.constant 0 : i32
    %c0_i32_1 = arith.constant 0 : i32
    %c0_i32_2 = arith.constant 0 : i32
    return %c0_i32, %c0_i32_0, %c0_i32_1 : i32, i32, i32
  }
  func.func @transform_3(%arg0: i32) -> (i32, i32, i32) {
    %c0_i32 = arith.constant 0 : i32
    %c0_i32_0 = arith.constant 0 : i32
    %c0_i32_1 = arith.constant 0 : i32
    %c0_i32_2 = arith.constant 0 : i32
    return %c0_i32, %c0_i32_0, %c0_i32_1 : i32, i32, i32
  }
  func.func @transform_4(%arg0: i32) -> (i32, i32, i32) {
    %c0_i32 = arith.constant 0 : i32
    %c0_i32_0 = arith.constant 0 : i32
    %c0_i32_1 = arith.constant 0 : i32
    %c0_i32_2 = arith.constant 0 : i32
    return %c0_i32, %c0_i32_0, %c0_i32_1 : i32, i32, i32
  }
  func.func @transform_5(%arg0: i32) -> (i32, i32, i32) {
    %c0_i32 = arith.constant 0 : i32
    %c0_i32_0 = arith.constant 0 : i32
    %c0_i32_1 = arith.constant 0 : i32
    %c0_i32_2 = arith.constant 0 : i32
    return %c0_i32, %c0_i32_0, %c0_i32_1 : i32, i32, i32
  }
  func.func @transform_6(%arg0: i32) -> (i32, i32, i32) {
    %c0_i32 = arith.constant 0 : i32
    %c0_i32_0 = arith.constant 0 : i32
    %c0_i32_1 = arith.constant 0 : i32
    %c0_i32_2 = arith.constant 0 : i32
    return %c0_i32, %c0_i32_0, %c0_i32_1 : i32, i32, i32
  }
  func.func @transform_7(%arg0: i32) -> (i32, i32, i32) {
    %c0_i32 = arith.constant 0 : i32
    %c0_i32_0 = arith.constant 0 : i32
    %c0_i32_1 = arith.constant 0 : i32
    %c0_i32_2 = arith.constant 0 : i32
    return %c0_i32, %c0_i32_0, %c0_i32_1 : i32, i32, i32
  }
  func.func @transform_8(%arg0: i32) -> (i32, i32) {
    %c0_i32 = arith.constant 0 : i32
    %c0_i32_0 = arith.constant 0 : i32
    %c0_i32_1 = arith.constant 0 : i32
    return %c0_i32, %c0_i32_0 : i32, i32
  }
  func.func @transform_9(%arg0: i32) -> (i32, i32) {
    %c0_i32 = arith.constant 0 : i32
    %c0_i32_0 = arith.constant 0 : i32
    %c0_i32_1 = arith.constant 0 : i32
    return %c0_i32, %c0_i32_0 : i32, i32
  }
  func.func @transform_10(%arg0: i32) -> (i32, i32) {
    %c0_i32 = arith.constant 0 : i32
    %c0_i32_0 = arith.constant 0 : i32
    %c0_i32_1 = arith.constant 0 : i32
    return %c0_i32, %c0_i32_0 : i32, i32
  }
  func.func @transform_11(%arg0: i32) -> (i32, i32, i32) {
    %c0_i32 = arith.constant 0 : i32
    %c0_i32_0 = arith.constant 0 : i32
    %c0_i32_1 = arith.constant 0 : i32
    return %arg0, %c0_i32, %c0_i32_0 : i32, i32, i32
  }
}

</mosaic_0001>

<llo_original>
// kernel: transformer_classifier.9
$region0: #{transformer_classifier.9}
  #allocation0 [shape = 'u32[]', space=smem, size = 0x4, offset = 0x4, fixed_abs, tag = 'smem constant byte address 0x4 - core index']
  #allocation1 [shape = 'u32[144,128]{1,0:T(1,128)}', space=vmem, size = 0x12000, scoped, tag = 'internal scratch']
  %s0 = inlined_call_operand.vmem [shape: bf16[2,8,32], index: 0, kind: input, shape index: {}]
  %s1 = inlined_call_operand.vmem [shape: bf16[32,64], index: 1, kind: input, shape index: {}]
  %s2 = inlined_call_operand.vmem [shape: f32[1,64], index: 2, kind: input, shape index: {}]
  %s3 = inlined_call_operand.vmem [shape: bf16[64,5], index: 3, kind: input, shape index: {}]
  %s4 = inlined_call_operand.vmem [shape: f32[1,5], index: 4, kind: input, shape index: {}]
  %s5 = inlined_call_operand.hbm [shape: f32[2,5], index: 5, kind: output, shape index: {}]
  %s6 = sld [smem:[#allocation0]]
  $region30: #{transformer_classifier.9} parent=0
    _
  %s8 = ssub.s32 1, %s6
  %s9 = scalar_select 0, %s8, %s6
  $region1: #{transformer_classifier.9} parent=0
    #allocation2 [shape = 'u8[1024]{0}', space=vmem, size = 0x400, scoped, tag = 'output window, operand 0, single buffered']
    #allocation3 [shape = 's32[1]{0}', space=sflag, size = 0x4, scoped, tag = 'scoped memory for transformer_classifier.9']
    %10 = vsyncpa [#allocation3], 0
    // Predicated region
    $region2: #{transformer_classifier.9} parent=1 // pred_check
      _
    $region3: #{transformer_classifier.9} parent=1 // pred_check_branch
      %12 = sbr.rel (0) target = $region5
    $region4: #{transformer_classifier.9} parent=1 // pred_region
      _
    $region5: #{transformer_classifier.9} parent=1 // pred_fallthru
      _
    // Predicated region
    $region6: #{transformer_classifier.9} parent=1 // pred_check
      _
    $region7: #{transformer_classifier.9} parent=1 // pred_check_branch
      %14 = sbr.rel (0) target = $region9
    $region8: #{transformer_classifier.9} parent=1 // pred_region
      _
    $region9: #{transformer_classifier.9} parent=1 // pred_fallthru
      _
    // Predicated region
    $region10: #{transformer_classifier.9} parent=1 // pred_check
      _
    $region11: #{transformer_classifier.9} parent=1 // pred_check_branch
      %16 = sbr.rel (0) target = $region13
    $region12: #{transformer_classifier.9} parent=1 // pred_region
      _
    $region13: #{transformer_classifier.9} parent=1 // pred_fallthru
      _
    // Predicated region
    $region14: #{transformer_classifier.9} parent=1 // pred_check
      _
    $region15: #{transformer_classifier.9} parent=1 // pred_check_branch
      %18 = sbr.rel (0) target = $region17
    $region16: #{transformer_classifier.9} parent=1 // pred_region
      _
    $region17: #{transformer_classifier.9} parent=1 // pred_fallthru
      _
    // Predicated region
    $region18: #{transformer_classifier.9} parent=1 // pred_check
      _
    $region19: #{transformer_classifier.9} parent=1 // pred_check_branch
      %20 = sbr.rel (0) target = $region21
    $region20: #{transformer_classifier.9} parent=1 // pred_region
      _
    $region21: #{transformer_classifier.9} parent=1 // pred_fallthru
      _
    %v22 = vld [vmem:[%s0] sm:$0xf]
    %v23 = vld [vmem:[%s0 + $0x4] sm:$0xf]
    %v24 = vunpack.c.l.bf16 %v22
    %v25 = vunpack.c.l.bf16 %v23
    %vm26 = vcmask 261120
    %v27 = vsel %vm26, %v24, 0.0
    %v28 = vrot.slane %v27, 4
    %v29 = vadd.f32 %v27, %v28
    %v30 = vrot.slane %v29, 2
    %v31 = vadd.f32 %v29, %v30
    %v32 = vrot.slane %v31, 1
    %v33 = vadd.f32 %v31, %v32
    %v34 = vsel %vm26, %v25, 0.0
    %v35 = vrot.slane %v34, 4
    %v36 = vadd.f32 %v34, %v35
    %v37 = vrot.slane %v36, 2
    %v38 = vadd.f32 %v36, %v37
    %v39 = vrot.slane %v38, 1
    %v40 = vadd.f32 %v38, %v39
    %v41 = vrcp.pop 8.0
    %v42 = vmul.f32 %v33, %v41
    %v43 = vmul.f32 %v40, %v41
    %v44 = vpack.c.bf16 %v42, %v42
    %v45 = vpack.c.bf16 %v43, %v43
    %v46 = vld [vmem:[%s1] sm:$0xf]
    %v47 = vld [vmem:[%s1 + $0x4] sm:$0xf]
    %v48 = vld [vmem:[%s1 + $0x8] sm:$0xf]
    %v49 = vld [vmem:[%s1 + $0xc] sm:$0xf]
    %v50 = vld [vmem:[%s2] sm:$0x1]
    %v52 = vlaneseq
    %v53 = vshrl.u32 %v52, 7
    %v54 = vsub.s32 0, %v53
    %v55 = vrot.slane %v50, %v54
    %v59 = vunpack.c.l.b16 %v44
    %v60 = vunpack.c.l.b16 %v45
    %vm61 = vcmask 1041409
    %v62 = vsel %vm61, %v60, %v59
    %v63 = vpack.c.b16 %v62, %v62
    %v68 = vunpack.c.l.b16 %v46
    %v69 = vunpack.c.l.b16 %v47
    %v70 = vunpack.c.l.b16 %v48
    %v71 = vunpack.c.l.b16 %v49
    %v72 = vpack.c.b16 %v69, %v68
    %v73 = vpack.c.b16 %v71, %v70
    %v77 = vsel %vm26, %v63, 0
    %79 = vmatprep.subr.bf16.mxu0 0
    %80 = vmatpush1.bf16.msra.mxu0 %v72
    %81 = vmatprep.subr.bf16.mxu0 0
    %82 = vmatpush1.bf16.msra.mxu0 %v73
    %83 = vmatprep.subr.bf16.mxu0 0
    %84 = vmatpush1.bf16.msra.mxu0 0
    %85 = vmatprep.subr.bf16.mxu0 0
    %86 = vmatpush1.bf16.msra.mxu0 0
    %87 = vmatprep.subr.bf16.mxu0 0
    %88 = vmatpush1.bf16.msra.mxu0 0
    %89 = vmatprep.subr.bf16.mxu0 0
    %90 = vmatpush1.bf16.msra.mxu0 0
    %91 = vmatprep.subr.bf16.mxu0 0
    %92 = vmatpush1.bf16.msra.mxu0 0
    %93 = vmatprep.subr.bf16.mxu0 0
    %94 = vmatpush1.bf16.msra.mxu0 0
    %95 = vmatprep.subr.bf16.mxu0 0
    %96 = vmatpush1.bf16.msra.mxu0 0
    %97 = vmatprep.subr.bf16.mxu0 0
    %98 = vmatpush1.bf16.msra.mxu0 0
    %99 = vmatprep.subr.bf16.mxu0 0
    %100 = vmatpush1.bf16.msra.mxu0 0
    %101 = vmatprep.subr.bf16.mxu0 0
    %102 = vmatpush1.bf16.msra.mxu0 0
    %103 = vmatprep.subr.bf16.mxu0 0
    %104 = vmatpush1.bf16.msra.mxu0 0
    %105 = vmatprep.subr.bf16.mxu0 0
    %106 = vmatpush1.bf16.msra.mxu0 0
    %107 = vmatprep.subr.bf16.mxu0 0
    %108 = vmatpush1.bf16.msra.mxu0 0
    %109 = vmatprep.subr.bf16.mxu0 0
    %110 = vmatpush1.bf16.msra.mxu0 0
    %111 = vmatprep.mubr.bf16.mxu0 0
    %112 = vmatmul.mubr.bf16.gmra.mrb[0].mxu0 %v77
    %v113 = vpop.f32.mrb[0].mxu0
    %v114 = vadd.f32 %v55, %v113
    %v115 = vpop.f32.mrb[0].mxu0
    %v116 = vpop.f32.mrb[0].mxu0
    %v117 = vpop.f32.mrb[0].mxu0
    %118 = vdwg.mxu0
    %v119 = vmax.f32 %v114, 0.0
    %v120 = vpack.c.bf16 %v119, %v119
    %v121 = vld [vmem:[%s3] sm:$0xf]
    %v122 = vld [vmem:[%s3 + $0x4] sm:$0xf]
    %v123 = vld [vmem:[%s3 + $0x8] sm:$0xf]
    %v124 = vld [vmem:[%s3 + $0xc] sm:$0xf]
    %v125 = vld [vmem:[%s3 + $0x10] sm:$0xf]
    %v126 = vld [vmem:[%s3 + $0x14] sm:$0xf]
    %v127 = vld [vmem:[%s3 + $0x18] sm:$0xf]
    %v128 = vld [vmem:[%s3 + $0x1c] sm:$0xf]
    %v129 = vld [vmem:[%s4] sm:$0x1]
    %v131 = vlaneseq
    %v132 = vshrl.u32 %v131, 7
    %v133 = vsub.s32 0, %v132
    %v134 = vrot.slane %v129, %v133
    %v144 = vunpack.c.l.b16 %v121
    %v145 = vunpack.c.l.b16 %v122
    %v146 = vunpack.c.l.b16 %v123
    %v147 = vunpack.c.l.b16 %v124
    %v148 = vunpack.c.l.b16 %v125
    %v149 = vunpack.c.l.b16 %v126
    %v150 = vunpack.c.l.b16 %v127
    %v151 = vunpack.c.l.b16 %v128
    %v152 = vpack.c.b16 %v145, %v144
    %v153 = vpack.c.b16 %v147, %v146
    %v154 = vpack.c.b16 %v149, %v148
    %v155 = vpack.c.b16 %v151, %v150
    %vm160 = vcmask 523264
    %v162 = vsel %vm160, %v120, 0
    %164 = vmatprep.subr.bf16.mxu0 0
    %165 = vmatpush1.bf16.msra.mxu0 %v152
    %166 = vmatprep.subr.bf16.mxu0 0
    %167 = vmatpush1.bf16.msra.mxu0 %v153
    %168 = vmatprep.subr.bf16.mxu0 0
    %169 = vmatpush1.bf16.msra.mxu0 %v154
    %170 = vmatprep.subr.bf16.mxu0 0
    %171 = vmatpush1.bf16.msra.mxu0 %v155
    %172 = vmatprep.subr.bf16.mxu0 0
    %173 = vmatpush1.bf16.msra.mxu0 0
    %174 = vmatprep.subr.bf16.mxu0 0
    %175 = vmatpush1.bf16.msra.mxu0 0
    %176 = vmatprep.subr.bf16.mxu0 0
    %177 = vmatpush1.bf16.msra.mxu0 0
    %178 = vmatprep.subr.bf16.mxu0 0
    %179 = vmatpush1.bf16.msra.mxu0 0
    %180 = vmatprep.subr.bf16.mxu0 0
    %181 = vmatpush1.bf16.msra.mxu0 0
    %182 = vmatprep.subr.bf16.mxu0 0
    %183 = vmatpush1.bf16.msra.mxu0 0
    %184 = vmatprep.subr.bf16.mxu0 0
    %185 = vmatpush1.bf16.msra.mxu0 0
    %186 = vmatprep.subr.bf16.mxu0 0
    %187 = vmatpush1.bf16.msra.mxu0 0
    %188 = vmatprep.subr.bf16.mxu0 0
    %189 = vmatpush1.bf16.msra.mxu0 0
    %190 = vmatprep.subr.bf16.mxu0 0
    %191 = vmatpush1.bf16.msra.mxu0 0
    %192 = vmatprep.subr.bf16.mxu0 0
    %193 = vmatpush1.bf16.msra.mxu0 0
    %194 = vmatprep.subr.bf16.mxu0 0
    %195 = vmatpush1.bf16.msra.mxu0 0
    %196 = vmatprep.mubr.bf16.mxu0 0
    %197 = vmatmul.mubr.bf16.gmra.mrb[0].mxu0 %v162
    %v198 = vpop.f32.mrb[0].mxu0
    %v199 = vadd.f32 %v134, %v198
    %v200 = vpop.f32.mrb[0].mxu0
    %v201 = vpop.f32.mrb[0].mxu0
    %v202 = vpop.f32.mrb[0].mxu0
    %203 = vdwg.mxu0
    %vm204 = vcmask 33792
    %205 = vst.msk [vmem:[#allocation2] sm:$0x3] %vm204, %v199
    // Predicated region
    $region22: #{transformer_classifier.9} parent=1 // pred_check
      _
    $region23: #{transformer_classifier.9} parent=1 // pred_check_branch
      %207 = sbr.rel (0) target = $region25
    $region24: #{transformer_classifier.9} parent=1 // pred_region
      %s209 = ssub.s32 32, 32
      %210 = vsyncadd [#allocation3], %s209
      %s212 = sshll.u32 [#allocation2], 4
      %s213 = int_to_ptr.vmem [resolvable:$true] %s212
      %215 = dma.vmem_to_hbm [thread:$0]  %s213, 32, %s5, [#allocation3]
    $region25: #{transformer_classifier.9} parent=1 // pred_fallthru
      _
    // Predicated region
    $region26: #{transformer_classifier.9} parent=1 // pred_check
      _
    $region27: #{transformer_classifier.9} parent=1 // pred_check_branch
      %217 = sbr.rel (0) target = $region29
    $region28: #{transformer_classifier.9} parent=1 // pred_region
      %218 = dma.done [#allocation3], 32
    $region29: #{transformer_classifier.9} parent=1 // pred_fallthru
      _
    %219 = vsyncpa [#allocation3], 1

// kernel: transformer_classifier.6
$region0: #{transformer_classifier.6}
  #allocation0 [shape = 'u32[]', space=smem, size = 0x4, offset = 0x4, fixed_abs, tag = 'smem constant byte address 0x4 - core index']
  #allocation1 [shape = 'u32[144,128]{1,0:T(1,128)}', space=vmem, size = 0x12000, scoped, tag = 'internal scratch']
  %s0 = inlined_call_operand.vmem [shape: bf16[16,32], index: 0, kind: input, shape index: {}]
  %s1 = inlined_call_operand.vmem [shape: bf16[32,128], index: 1, kind: input, shape index: {}]
  %s2 = inlined_call_operand.vmem [shape: f32[1,128], index: 2, kind: input, shape index: {}]
  %s3 = inlined_call_operand.vmem [shape: bf16[128,32], index: 3, kind: input, shape index: {}]
  %s4 = inlined_call_operand.vmem [shape: f32[1,32], index: 4, kind: input, shape index: {}, may-alias: {4,6}]
  %s5 = inlined_call_operand.vmem [shape: f32[1,32], index: 5, kind: input, shape index: {}]
  %s6 = inlined_call_operand.vmem [shape: f32[1,32], index: 6, kind: input, shape index: {}, may-alias: {4,6}]
  %s7 = inlined_call_operand.vmem [shape: bf16[16,32], index: 7, kind: output, shape index: {}]
  %s8 = sld [smem:[#allocation0]]
  $region61: #{transformer_classifier.6} parent=0
    _
  %s10 = ssub.s32 1, %s8
  %s11 = scalar_select 0, %s10, %s8
  loop: start=0, step=1, limit=4
  $region2: #{transformer_classifier.6} parent=0 // loop_pre_header
    _
  $region3: #{transformer_classifier.6} parent=0 // loop_header
    %s13 = sphi 0, %s17
    %p14 = scmp.ge.s32.totalorder %s13, 4
    %s23 = sphi 0, %s25
    %s26 = sphi 0, %s23
    %s27 = sphi 0, %s26
    %s43 = sphi 0, %s27
    %s47 = sphi 0, %s47
    %s49 = sphi 0, %s47
    %s50 = sphi 0, %s49
    %s64 = sphi 0, %s50
    %s68 = sphi 0, %s68
    %s70 = sphi 0, %s68
    %s71 = sphi 0, %s70
    %s85 = sphi 0, %s71
    %s89 = sphi 0, %s89
    %s91 = sphi 0, %s89
    %s92 = sphi 0, %s91
    %s106 = sphi 0, %s92
    %s110 = sphi 0, %s110
    %s112 = sphi 0, %s110
    %s113 = sphi 0, %s112
    %s127 = sphi 0, %s113
    %s131 = sphi 0, %s131
    %s133 = sphi 0, %s131
    %s134 = sphi 0, %s133
    %s148 = sphi 0, %s134
    %s152 = sphi 0, %s152
    %s154 = sphi 0, %s152
    %s155 = sphi 0, %s154
    %s169 = sphi 0, %s155
    %s175 = sphi 0, %s177
    %s178 = sphi 0, %s175
    %s179 = sphi 0, %s178
    %s195 = sphi 0, %s179
  $region4: #{transformer_classifier.6} parent=0 // loop_header_branch
    %16 = sbr.rel (%p14) target = $region8
  $region5: #{transformer_classifier.6} parent=0 // loop_body
    %s18 = ssub.s32 %s13, 1
    %s19 = ssub.s32 %s13, 2
    %s20 = sadd.s32 %s13, 1
    %s21 = ssub.s32 %s13, %s20
    %p22 = scmp.eq.s32.totalorder %s21, 0
    %s24 = sadd.s32 %s23, 1
    %s25 = scalar_select %p22, %s23, %s24
    %p28 = pneg %p22
    %p29 = scmp.eq.s32.totalorder %s13, 1
    %p30 = por %p28, %p29
    %p31 = scmp.ne.s32.totalorder %s23, %s26
    %p32 = scmp.eq.s32.totalorder %s13, 0
    %p33 = por %p31, %p32
    %p34 = scmp.ne.s32.totalorder %s23, %s26
    %p35 = scmp.eq.s32.totalorder %s18, 1
    %p36 = por %p34, %p35
    %p37 = scmp.ne.s32.totalorder %s26, %s27
    %p38 = scmp.eq.s32.totalorder %s18, 0
    %p39 = por %p37, %p38
    %p40 = scmp.ne.s32.totalorder %s26, %s27
    %p41 = scmp.eq.s32.totalorder %s19, 1
    %p42 = por %p40, %p41
    %p44 = scmp.ne.s32.totalorder %s27, %s43
    %p45 = scmp.eq.s32.totalorder %s19, 0
    %p46 = por %p44, %p45
    %s48 = sadd.s32 %s47, 1
    %p51 = scmp.eq.s32.totalorder %s13, 1
    %p52 = scmp.ne.s32.totalorder %s47, %s49
    %p53 = scmp.eq.s32.totalorder %s13, 0
    %p54 = por %p52, %p53
    %p55 = scmp.ne.s32.totalorder %s47, %s49
    %p56 = scmp.eq.s32.totalorder %s18, 1
    %p57 = por %p55, %p56
    %p58 = scmp.ne.s32.totalorder %s49, %s50
    %p59 = scmp.eq.s32.totalorder %s18, 0
    %p60 = por %p58, %p59
    %p61 = scmp.ne.s32.totalorder %s49, %s50
    %p62 = scmp.eq.s32.totalorder %s19, 1
    %p63 = por %p61, %p62
    %p65 = scmp.ne.s32.totalorder %s50, %s64
    %p66 = scmp.eq.s32.totalorder %s19, 0
    %p67 = por %p65, %p66
    %s69 = sadd.s32 %s68, 1
    %p72 = scmp.eq.s32.totalorder %s13, 1
    %p73 = scmp.ne.s32.totalorder %s68, %s70
    %p74 = scmp.eq.s32.totalorder %s13, 0
    %p75 = por %p73, %p74
    %p76 = scmp.ne.s32.totalorder %s68, %s70
    %p77 = scmp.eq.s32.totalorder %s18, 1
    %p78 = por %p76, %p77
    %p79 = scmp.ne.s32.totalorder %s70, %s71
    %p80 = scmp.eq.s32.totalorder %s18, 0
    %p81 = por %p79, %p80
    %p82 = scmp.ne.s32.totalorder %s70, %s71
    %p83 = scmp.eq.s32.totalorder %s19, 1
    %p84 = por %p82, %p83
    %p86 = scmp.ne.s32.totalorder %s71, %s85
    %p87 = scmp.eq.s32.totalorder %s19, 0
    %p88 = por %p86, %p87
    %s90 = sadd.s32 %s89, 1
    %p93 = scmp.eq.s32.totalorder %s13, 1
    %p94 = scmp.ne.s32.totalorder %s89, %s91
    %p95 = scmp.eq.s32.totalorder %s13, 0
    %p96 = por %p94, %p95
    %p97 = scmp.ne.s32.totalorder %s89, %s91
    %p98 = scmp.eq.s32.totalorder %s18, 1
    %p99 = por %p97, %p98
    %p100 = scmp.ne.s32.totalorder %s91, %s92
    %p101 = scmp.eq.s32.totalorder %s18, 0
    %p102 = por %p100, %p101
    %p103 = scmp.ne.s32.totalorder %s91, %s92
    %p104 = scmp.eq.s32.totalorder %s19, 1
    %p105 = por %p103, %p104
    %p107 = scmp.ne.s32.totalorder %s92, %s106
    %p108 = scmp.eq.s32.totalorder %s19, 0
    %p109 = por %p107, %p108
    %s111 = sadd.s32 %s110, 1
    %p114 = scmp.eq.s32.totalorder %s13, 1
    %p115 = scmp.ne.s32.totalorder %s110, %s112
    %p116 = scmp.eq.s32.totalorder %s13, 0
    %p117 = por %p115, %p116
    %p118 = scmp.ne.s32.totalorder %s110, %s112
    %p119 = scmp.eq.s32.totalorder %s18, 1
    %p120 = por %p118, %p119
    %p121 = scmp.ne.s32.totalorder %s112, %s113
    %p122 = scmp.eq.s32.totalorder %s18, 0
    %p123 = por %p121, %p122
    %p124 = scmp.ne.s32.totalorder %s112, %s113
    %p125 = scmp.eq.s32.totalorder %s19, 1
    %p126 = por %p124, %p125
    %p128 = scmp.ne.s32.totalorder %s113, %s127
    %p129 = scmp.eq.s32.totalorder %s19, 0
    %p130 = por %p128, %p129
    %s132 = sadd.s32 %s131, 1
    %p135 = scmp.eq.s32.totalorder %s13, 1
    %p136 = scmp.ne.s32.totalorder %s131, %s133
    %p137 = scmp.eq.s32.totalorder %s13, 0
    %p138 = por %p136, %p137
    %p139 = scmp.ne.s32.totalorder %s131, %s133
    %p140 = scmp.eq.s32.totalorder %s18, 1
    %p141 = por %p139, %p140
    %p142 = scmp.ne.s32.totalorder %s133, %s134
    %p143 = scmp.eq.s32.totalorder %s18, 0
    %p144 = por %p142, %p143
    %p145 = scmp.ne.s32.totalorder %s133, %s134
    %p146 = scmp.eq.s32.totalorder %s19, 1
    %p147 = por %p145, %p146
    %p149 = scmp.ne.s32.totalorder %s134, %s148
    %p150 = scmp.eq.s32.totalorder %s19, 0
    %p151 = por %p149, %p150
    %s153 = sadd.s32 %s152, 1
    %p156 = scmp.eq.s32.totalorder %s13, 1
    %p157 = scmp.ne.s32.totalorder %s152, %s154
    %p158 = scmp.eq.s32.totalorder %s13, 0
    %p159 = por %p157, %p158
    %p160 = scmp.ne.s32.totalorder %s152, %s154
    %p161 = scmp.eq.s32.totalorder %s18, 1
    %p162 = por %p160, %p161
    %p163 = scmp.ne.s32.totalorder %s154, %s155
    %p164 = scmp.eq.s32.totalorder %s18, 0
    %p165 = por %p163, %p164
    %p166 = scmp.ne.s32.totalorder %s154, %s155
    %p167 = scmp.eq.s32.totalorder %s19, 1
    %p168 = por %p166, %p167
    %p170 = scmp.ne.s32.totalorder %s155, %s169
    %p171 = scmp.eq.s32.totalorder %s19, 0
    %p172 = por %p170, %p171
    %s173 = ssub.s32 %s13, %s20
    %p174 = scmp.eq.s32.totalorder %s173, 0
    %s176 = sadd.s32 %s175, 1
    %s177 = scalar_select %p174, %s175, %s176
    %p180 = pneg %p174
    %p181 = scmp.eq.s32.totalorder %s13, 1
    %p182 = por %p180, %p181
    %p183 = scmp.ne.s32.totalorder %s175, %s178
    %p184 = scmp.eq.s32.totalorder %s13, 0
    %p185 = por %p183, %p184
    %p186 = scmp.ne.s32.totalorder %s175, %s178
    %p187 = scmp.eq.s32.totalorder %s18, 1
    %p188 = por %p186, %p187
    %p189 = scmp.ne.s32.totalorder %s178, %s179
    %p190 = scmp.eq.s32.totalorder %s18, 0
    %p191 = por %p189, %p190
    %p192 = scmp.ne.s32.totalorder %s178, %s179
    %p193 = scmp.eq.s32.totalorder %s19, 1
    %p194 = por %p192, %p193
    %p196 = scmp.ne.s32.totalorder %s179, %s195
    %p197 = scmp.eq.s32.totalorder %s19, 0
    %p198 = por %p196, %p197
    %p199 = scmp.le.s32.totalorder 1, %s13
    %p200 = scmp.lt.s32.totalorder %s13, 3
    %p201 = pnand %p199, %p200
    %p202 = pneg %p201
    // Predicated region
    $region9: #{transformer_classifier.6} parent=5 // pred_check
      _
    $region10: #{transformer_classifier.6} parent=5 // pred_check_branch
      %204 = sbr.rel (%p201) target = $region12
    $region11: #{transformer_classifier.6} parent=5 // pred_region
      %s205 = ssub.s32 %s13, 1
      // Predicated region
      $region13: #{transformer_classifier.6} parent=11 // pred_check
        %p206 = pneg %p60
      $region14: #{transformer_classifier.6} parent=11 // pred_check_branch
        %208 = sbr.rel (%p206) target = $region16
      $region15: #{transformer_classifier.6} parent=11 // pred_region
        _
      $region16: #{transformer_classifier.6} parent=11 // pred_fallthru
        _
      // Predicated region
      $region17: #{transformer_classifier.6} parent=11 // pred_check
        %p209 = pneg %p81
      $region18: #{transformer_classifier.6} parent=11 // pred_check_branch
        %211 = sbr.rel (%p209) target = $region20
      $region19: #{transformer_classifier.6} parent=11 // pred_region
        _
      $region20: #{transformer_classifier.6} parent=11 // pred_fallthru
        _
      // Predicated region
      $region21: #{transformer_classifier.6} parent=11 // pred_check
        %p212 = pneg %p102
      $region22: #{transformer_classifier.6} parent=11 // pred_check_branch
        %214 = sbr.rel (%p212) target = $region24
      $region23: #{transformer_classifier.6} parent=11 // pred_region
        _
      $region24: #{transformer_classifier.6} parent=11 // pred_fallthru
        _
      // Predicated region
      $region25: #{transformer_classifier.6} parent=11 // pred_check
        %p215 = pneg %p123
      $region26: #{transformer_classifier.6} parent=11 // pred_check_branch
        %217 = sbr.rel (%p215) target = $region28
      $region27: #{transformer_classifier.6} parent=11 // pred_region
        _
      $region28: #{transformer_classifier.6} parent=11 // pred_fallthru
        _
      // Predicated region
      $region29: #{transformer_classifier.6} parent=11 // pred_check
        %p218 = pneg %p144
      $region30: #{transformer_classifier.6} parent=11 // pred_check_branch
        %220 = sbr.rel (%p218) target = $region32
      $region31: #{transformer_classifier.6} parent=11 // pred_region
        _
      $region32: #{transformer_classifier.6} parent=11 // pred_fallthru
        _
      // Predicated region
      $region33: #{transformer_classifier.6} parent=11 // pred_check
        %p221 = pneg %p165
      $region34: #{transformer_classifier.6} parent=11 // pred_check_branch
        %223 = sbr.rel (%p221) target = $region36
      $region35: #{transformer_classifier.6} parent=11 // pred_region
        _
      $region36: #{transformer_classifier.6} parent=11 // pred_fallthru
        _
    $region12: #{transformer_classifier.6} parent=5 // pred_fallthru
      _
    %p224 = scmp.lt.s32.totalorder %s13, 2
    // Predicated region
    $region37: #{transformer_classifier.6} parent=5 // pred_check
      %p225 = pneg %p224
    $region38: #{transformer_classifier.6} parent=5 // pred_check_branch
      %227 = sbr.rel (%p225) target = $region40
    $region39: #{transformer_classifier.6} parent=5 // pred_region
      // Predicated region
      $region41: #{transformer_classifier.6} parent=39 // pred_check
        %p228 = pneg %p33
      $region42: #{transformer_classifier.6} parent=39 // pred_check_branch
        %230 = sbr.rel (%p228) target = $region44
      $region43: #{transformer_classifier.6} parent=39 // pred_region
        %p231 = scmp.lt.s32.totalorder %s13, 1
        %s232 = scalar_select %p231, %s13, 1
        %s233 = smul.addr %s232, 4
        %s234 = scalar_lea.vmem %s0, %s233
      $region44: #{transformer_classifier.6} parent=39 // pred_fallthru
        _
    $region40: #{transformer_classifier.6} parent=5 // pred_fallthru
      _
    %p235 = scmp.le.s32.totalorder 1, %s13
    %p236 = scmp.lt.s32.totalorder %s13, 3
    %p237 = pnand %p235, %p236
    %p238 = pneg %p237
    // Predicated region
    $region45: #{transformer_classifier.6} parent=5 // pred_check
      _
    $region46: #{transformer_classifier.6} parent=5 // pred_check_branch
      %240 = sbr.rel (%p237) target = $region48
    $region47: #{transformer_classifier.6} parent=5 // pred_region
      %s241 = ssub.s32 %s13, 1
      %p242 = scmp.lt.s32.totalorder %s18, 1
      %s243 = scalar_select %p242, %s18, 1
      %s244 = smul.addr %s243, 4
      %s245 = scalar_lea.vmem %s0, %s244
      %p246 = pneg %p39
      %p247 = pneg %p36
      %p248 = pneg %p60
      %p249 = pneg %p57
      %p250 = pneg %p81
      %p251 = pneg %p78
      %p252 = pneg %p102
      %p253 = pneg %p99
      %p254 = pneg %p123
      %p255 = pneg %p120
      %p256 = pneg %p144
      %p257 = pneg %p141
      %p258 = pneg %p165
      %p259 = pneg %p162
      %p260 = pneg %p191
      %p261 = pneg %p188
      %p262 = scmp.lt.s32.totalorder %s18, 1
      %s263 = scalar_select %p262, %s18, 1
      %s264 = smul.addr %s263, 4
      %s265 = scalar_lea.vmem %s7, %s264
      %p266 = scmp.lt.s32.totalorder %s18, 1
      %s267 = scalar_select %p266, %s18, 1
      %s268 = smul.addr %s267, 4
      %s269 = scalar_lea.vmem %s0, %s268
      %p270 = scmp.lt.s32.totalorder %s18, 1
      %s271 = scalar_select %p270, %s18, 1
      %s272 = smul.addr %s271, 4
      %s273 = scalar_lea.vmem %s7, %s272
      %v275 = vld [vmem:[%s269] sm:$0xf]
      %v276 = vld [vmem:[%s1] sm:$0xf]
      %v277 = vld [vmem:[%s1 + $0x4] sm:$0xf]
      %v278 = vld [vmem:[%s1 + $0x8] sm:$0xf]
      %v279 = vld [vmem:[%s1 + $0xc] sm:$0xf]
      %v280 = vld [vmem:[%s2] sm:$0x1]
      %v282 = vlaneseq
      %v283 = vshrl.u32 %v282, 7
      %v284 = vsub.s32 0, %v283
      %v285 = vrot.slane %v280, %v284
      %v291 = vunpack.c.l.b16 %v276
      %v292 = vunpack.c.l.b16 %v277
      %v293 = vunpack.c.l.b16 %v278
      %v294 = vunpack.c.l.b16 %v279
      %v295 = vpack.c.b16 %v292, %v291
      %v296 = vpack.c.b16 %v294, %v293
      %vm299 = vcmask 261120
      %v301 = vsel %vm299, %v275, 0
      %303 = vmatprep.subr.bf16.mxu0 0
      %304 = vmatpush1.bf16.msra.mxu0 %v295
      %305 = vmatprep.subr.bf16.mxu0 0
      %306 = vmatpush1.bf16.msra.mxu0 %v296
      %307 = vmatprep.subr.bf16.mxu0 0
      %308 = vmatpush1.bf16.msra.mxu0 0
      %309 = vmatprep.subr.bf16.mxu0 0
      %310 = vmatpush1.bf16.msra.mxu0 0
      %311 = vmatprep.subr.bf16.mxu0 0
      %312 = vmatpush1.bf16.msra.mxu0 0
      %313 = vmatprep.subr.bf16.mxu0 0
      %314 = vmatpush1.bf16.msra.mxu0 0
      %315 = vmatprep.subr.bf16.mxu0 0
      %316 = vmatpush1.bf16.msra.mxu0 0
      %317 = vmatprep.subr.bf16.mxu0 0
      %318 = vmatpush1.bf16.msra.mxu0 0
      %319 = vmatprep.subr.bf16.mxu0 0
      %320 = vmatpush1.bf16.msra.mxu0 0
      %321 = vmatprep.subr.bf16.mxu0 0
      %322 = vmatpush1.bf16.msra.mxu0 0
      %323 = vmatprep.subr.bf16.mxu0 0
      %324 = vmatpush1.bf16.msra.mxu0 0
      %325 = vmatprep.subr.bf16.mxu0 0
      %326 = vmatpush1.bf16.msra.mxu0 0
      %327 = vmatprep.subr.bf16.mxu0 0
      %328 = vmatpush1.bf16.msra.mxu0 0
      %329 = vmatprep.subr.bf16.mxu0 0
      %330 = vmatpush1.bf16.msra.mxu0 0
      %331 = vmatprep.subr.bf16.mxu0 0
      %332 = vmatpush1.bf16.msra.mxu0 0
      %333 = vmatprep.subr.bf16.mxu0 0
      %334 = vmatpush1.bf16.msra.mxu0 0
      %335 = vmatprep.mubr.bf16.mxu0 0
      %336 = vmatmul.mubr.bf16.gmra.mrb[0].mxu0 %v301
      %v337 = vpop.f32.mrb[0].mxu0
      %v338 = vadd.f32 %v285, %v337
      %v339 = vpop.f32.mrb[0].mxu0
      %v340 = vpop.f32.mrb[0].mxu0
      %v341 = vpop.f32.mrb[0].mxu0
      %342 = vdwg.mxu0
      %v343 = vmax.f32 %v338, 0.0
      %v344 = vpack.c.bf16 %v343, %v343
      %v345 = vld [vmem:[%s3] sm:$0xf]
      %v346 = vld [vmem:[%s3 + $0x4] sm:$0xf]
      %v347 = vld [vmem:[%s3 + $0x8] sm:$0xf]
      %v348 = vld [vmem:[%s3 + $0xc] sm:$0xf]
      %v349 = vld [vmem:[%s3 + $0x10] sm:$0xf]
      %v350 = vld [vmem:[%s3 + $0x14] sm:$0xf]
      %v351 = vld [vmem:[%s3 + $0x18] sm:$0xf]
      %v352 = vld [vmem:[%s3 + $0x1c] sm:$0xf]
      %v353 = vld [vmem:[%s3 + $0x20] sm:$0xf]
      %v354 = vld [vmem:[%s3 + $0x24] sm:$0xf]
      %v355 = vld [vmem:[%s3 + $0x28] sm:$0xf]
      %v356 = vld [vmem:[%s3 + $0x2c] sm:$0xf]
      %v357 = vld [vmem:[%s3 + $0x30] sm:$0xf]
      %v358 = vld [vmem:[%s3 + $0x34] sm:$0xf]
      %v359 = vld [vmem:[%s3 + $0x38] sm:$0xf]
      %v360 = vld [vmem:[%s3 + $0x3c] sm:$0xf]
      %v361 = vld [vmem:[%s4] sm:$0x1]
      %v363 = vlaneseq
      %v364 = vshrl.u32 %v363, 7
      %v365 = vsub.s32 0, %v364
      %v366 = vrot.slane %v361, %v365
      %v384 = vunpack.c.l.b16 %v345
      %v385 = vunpack.c.l.b16 %v346
      %v386 = vunpack.c.l.b16 %v347
      %v387 = vunpack.c.l.b16 %v348
      %v388 = vunpack.c.l.b16 %v349
      %v389 = vunpack.c.l.b16 %v350
      %v390 = vunpack.c.l.b16 %v351
      %v391 = vunpack.c.l.b16 %v352
      %v392 = vunpack.c.l.b16 %v353
      %v393 = vunpack.c.l.b16 %v354
      %v394 = vunpack.c.l.b16 %v355
      %v395 = vunpack.c.l.b16 %v356
      %v396 = vunpack.c.l.b16 %v357
      %v397 = vunpack.c.l.b16 %v358
      %v398 = vunpack.c.l.b16 %v359
      %v399 = vunpack.c.l.b16 %v360
      %v400 = vpack.c.b16 %v385, %v384
      %v401 = vpack.c.b16 %v387, %v386
      %v402 = vpack.c.b16 %v389, %v388
      %v403 = vpack.c.b16 %v391, %v390
      %v404 = vpack.c.b16 %v393, %v392
      %v405 = vpack.c.b16 %v395, %v394
      %v406 = vpack.c.b16 %v397, %v396
      %v407 = vpack.c.b16 %v399, %v398
      %416 = vmatprep.subr.bf16.mxu0 0
      %417 = vmatpush1.bf16.msra.mxu0 %v400
      %418 = vmatprep.subr.bf16.mxu0 0
      %419 = vmatpush1.bf16.msra.mxu0 %v401
      %420 = vmatprep.subr.bf16.mxu0 0
      %421 = vmatpush1.bf16.msra.mxu0 %v402
      %422 = vmatprep.subr.bf16.mxu0 0
      %423 = vmatpush1.bf16.msra.mxu0 %v403
      %424 = vmatprep.subr.bf16.mxu0 0
      %425 = vmatpush1.bf16.msra.mxu0 %v404
      %426 = vmatprep.subr.bf16.mxu0 0
      %427 = vmatpush1.bf16.msra.mxu0 %v405
      %428 = vmatprep.subr.bf16.mxu0 0
      %429 = vmatpush1.bf16.msra.mxu0 %v406
      %430 = vmatprep.subr.bf16.mxu0 0
      %431 = vmatpush1.bf16.msra.mxu0 %v407
      %432 = vmatprep.subr.bf16.mxu0 0
      %433 = vmatpush1.bf16.msra.mxu0 0
      %434 = vmatprep.subr.bf16.mxu0 0
      %435 = vmatpush1.bf16.msra.mxu0 0
      %436 = vmatprep.subr.bf16.mxu0 0
      %437 = vmatpush1.bf16.msra.mxu0 0
      %438 = vmatprep.subr.bf16.mxu0 0
      %439 = vmatpush1.bf16.msra.mxu0 0
      %440 = vmatprep.subr.bf16.mxu0 0
      %441 = vmatpush1.bf16.msra.mxu0 0
      %442 = vmatprep.subr.bf16.mxu0 0
      %443 = vmatpush1.bf16.msra.mxu0 0
      %444 = vmatprep.subr.bf16.mxu0 0
      %445 = vmatpush1.bf16.msra.mxu0 0
      %446 = vmatprep.subr.bf16.mxu0 0
      %447 = vmatpush1.bf16.msra.mxu0 0
      %448 = vmatprep.mubr.bf16.mxu0 0
      %449 = vmatmul.mubr.bf16.gmra.mrb[0].mxu0 %v344
      %v450 = vpop.f32.mrb[0].mxu0
      %v451 = vadd.f32 %v366, %v450
      %v452 = vpop.f32.mrb[0].mxu0
      %v453 = vpop.f32.mrb[0].mxu0
      %v454 = vpop.f32.mrb[0].mxu0
      %455 = vdwg.mxu0
      %v456 = vunpack.c.l.bf16 %v275
      %v457 = vadd.f32 %v456, %v451
      %v458 = vsel %vm299, %v457, 0.0
      %459 = vadd.xlane.f32.xlu0 %v458
      %v460 = vpop.xlane.xlu0 %459
      %v461 = vrcp.pop 32.0
      %v462 = vmul.f32 %v460, %v461
      %v463 = vsub.f32 %v457, %v462
      %v464 = vmul.f32 %v463, %v463
      %v465 = vsel %vm299, %v464, 0.0
      %466 = vadd.xlane.f32.xlu0 %v465
      %v467 = vpop.xlane.xlu0 %466
      %v468 = vmul.f32 %v467, %v461
      %v469 = vadd.f32 %v468, 1e-05
      %v470 = vrsqrt.pop %v469
      %v471 = vmul.f32 %v463, %v470
      %v472 = vld [vmem:[%s5] sm:$0x1]
      %v474 = vlaneseq
      %v475 = vshrl.u32 %v474, 7
      %v476 = vsub.s32 0, %v475
      %v477 = vrot.slane %v472, %v476
      %v479 = vmul.f32 %v471, %v477
      %v480 = vld [vmem:[%s6] sm:$0x1]
      %v482 = vlaneseq
      %v483 = vshrl.u32 %v482, 7
      %v484 = vsub.s32 0, %v483
      %v485 = vrot.slane %v480, %v484
      %v487 = vadd.f32 %v479, %v485
      %v488 = vpack.c.bf16 %v487, %v487
      %vm489 = vcmask 257024
      %490 = vst.msk [vmem:[%s273] sm:$0xf] %vm489, %v488
      %p491 = scmp.lt.s32.totalorder %s18, 1
      %s492 = scalar_select %p491, %s18, 1
      %s493 = smul.addr %s492, 4
      %s494 = scalar_lea.vmem %s7, %s493
      // Predicated region
      $region49: #{transformer_classifier.6} parent=47 // pred_check
        %p495 = pneg %p188
      $region50: #{transformer_classifier.6} parent=47 // pred_check_branch
        %497 = sbr.rel (%p495) target = $region52
      $region51: #{transformer_classifier.6} parent=47 // pred_region
        _
      $region52: #{transformer_classifier.6} parent=47 // pred_fallthru
        _
    $region48: #{transformer_classifier.6} parent=5 // pred_fallthru
      _
    %p498 = scmp.le.s32.totalorder 2, %s13
    // Predicated region
    $region53: #{transformer_classifier.6} parent=5 // pred_check
      %p499 = pneg %p498
    $region54: #{transformer_classifier.6} parent=5 // pred_check_branch
      %501 = sbr.rel (%p499) target = $region56
    $region55: #{transformer_classifier.6} parent=5 // pred_region
      %s502 = ssub.s32 %s13, 2
      // Predicated region
      $region57: #{transformer_classifier.6} parent=55 // pred_check
        %p503 = pneg %p194
      $region58: #{transformer_classifier.6} parent=55 // pred_check_branch
        %505 = sbr.rel (%p503) target = $region60
      $region59: #{transformer_classifier.6} parent=55 // pred_region
        %p506 = scmp.lt.s32.totalorder %s19, 1
        %s507 = scalar_select %p506, %s19, 1
        %s508 = smul.addr %s507, 4
        %s509 = scalar_lea.vmem %s7, %s508
      $region60: #{transformer_classifier.6} parent=55 // pred_fallthru
        _
    $region56: #{transformer_classifier.6} parent=5 // pred_fallthru
      _
  $region6: #{transformer_classifier.6} parent=0 // loop_footer
    %s17 = sadd.s32 1, %s13
  $region7: #{transformer_classifier.6} parent=0 // loop_footer_branch
    %12 = sbr.rel target = $region3
  $region8: #{transformer_classifier.6} parent=0 // loop_exit
    _

// kernel: transformer_classifier.5
$region0: #{transformer_classifier.5}
  #allocation0 [shape = 'u32[]', space=smem, size = 0x4, offset = 0x4, fixed_abs, tag = 'smem constant byte address 0x4 - core index']
  #allocation1 [shape = 'u32[144,128]{1,0:T(1,128)}', space=vmem, size = 0x12000, scoped, tag = 'internal scratch']
  %s0 = inlined_call_operand.vmem [shape: bf16[2,8,32], index: 0, kind: input, shape index: {}]
  %s1 = inlined_call_operand.vmem [shape: bf16[4,32,8], index: 1, kind: input, shape index: {}]
  %s2 = inlined_call_operand.vmem [shape: bf16[4,32,8], index: 2, kind: input, shape index: {}]
  %s3 = inlined_call_operand.vmem [shape: bf16[4,32,8], index: 3, kind: input, shape index: {}]
  %s4 = inlined_call_operand.vmem [shape: f32[4,1,8], index: 4, kind: input, shape index: {}, may-alias: {4,5,6}]
  %s5 = inlined_call_operand.vmem [shape: f32[4,1,8], index: 5, kind: input, shape index: {}, may-alias: {4,5,6}]
  %s6 = inlined_call_operand.vmem [shape: f32[4,1,8], index: 6, kind: input, shape index: {}, may-alias: {4,5,6}]
  %s7 = inlined_call_operand.vmem [shape: bf16[4,8,32], index: 7, kind: input, shape index: {}]
  %s8 = inlined_call_operand.vmem [shape: f32[1,32], index: 8, kind: input, shape index: {}, may-alias: {8,10}]
  %s9 = inlined_call_operand.vmem [shape: f32[1,32], index: 9, kind: input, shape index: {}]
  %s10 = inlined_call_operand.vmem [shape: f32[1,32], index: 10, kind: input, shape index: {}, may-alias: {8,10}]
  %s11 = inlined_call_operand.vmem [shape: bf16[2,8,32], index: 11, kind: output, shape index: {}]
  %s12 = sld [smem:[#allocation0]]
  $region84: #{transformer_classifier.5} parent=0
    _
  %s14 = ssub.s32 1, %s12
  %s15 = scalar_select 0, %s14, %s12
  loop: start=0, step=1, limit=4
  $region2: #{transformer_classifier.5} parent=0 // loop_pre_header
    _
  $region3: #{transformer_classifier.5} parent=0 // loop_header
    %s17 = sphi 0, %s21
    %p18 = scmp.ge.s32.totalorder %s17, 4
    %s27 = sphi 0, %s29
    %s30 = sphi 0, %s27
    %s31 = sphi 0, %s30
    %s47 = sphi 0, %s31
    %s51 = sphi 0, %s51
    %s53 = sphi 0, %s51
    %s54 = sphi 0, %s53
    %s68 = sphi 0, %s54
    %s72 = sphi 0, %s72
    %s74 = sphi 0, %s72
    %s75 = sphi 0, %s74
    %s89 = sphi 0, %s75
    %s93 = sphi 0, %s93
    %s95 = sphi 0, %s93
    %s96 = sphi 0, %s95
    %s110 = sphi 0, %s96
    %s114 = sphi 0, %s114
    %s116 = sphi 0, %s114
    %s117 = sphi 0, %s116
    %s131 = sphi 0, %s117
    %s135 = sphi 0, %s135
    %s137 = sphi 0, %s135
    %s138 = sphi 0, %s137
    %s152 = sphi 0, %s138
    %s156 = sphi 0, %s156
    %s158 = sphi 0, %s156
    %s159 = sphi 0, %s158
    %s173 = sphi 0, %s159
    %s177 = sphi 0, %s177
    %s179 = sphi 0, %s177
    %s180 = sphi 0, %s179
    %s194 = sphi 0, %s180
    %s198 = sphi 0, %s198
    %s200 = sphi 0, %s198
    %s201 = sphi 0, %s200
    %s215 = sphi 0, %s201
    %s219 = sphi 0, %s219
    %s221 = sphi 0, %s219
    %s222 = sphi 0, %s221
    %s236 = sphi 0, %s222
    %s240 = sphi 0, %s240
    %s242 = sphi 0, %s240
    %s243 = sphi 0, %s242
    %s257 = sphi 0, %s243
    %s263 = sphi 0, %s265
    %s266 = sphi 0, %s263
    %s267 = sphi 0, %s266
    %s283 = sphi 0, %s267
  $region4: #{transformer_classifier.5} parent=0 // loop_header_branch
    %20 = sbr.rel (%p18) target = $region8
  $region5: #{transformer_classifier.5} parent=0 // loop_body
    %s22 = ssub.s32 %s17, 1
    %s23 = ssub.s32 %s17, 2
    %s24 = sadd.s32 %s17, 1
    %s25 = ssub.s32 %s17, %s24
    %p26 = scmp.eq.s32.totalorder %s25, 0
    %s28 = sadd.s32 %s27, 1
    %s29 = scalar_select %p26, %s27, %s28
    %p32 = pneg %p26
    %p33 = scmp.eq.s32.totalorder %s17, 1
    %p34 = por %p32, %p33
    %p35 = scmp.ne.s32.totalorder %s27, %s30
    %p36 = scmp.eq.s32.totalorder %s17, 0
    %p37 = por %p35, %p36
    %p38 = scmp.ne.s32.totalorder %s27, %s30
    %p39 = scmp.eq.s32.totalorder %s22, 1
    %p40 = por %p38, %p39
    %p41 = scmp.ne.s32.totalorder %s30, %s31
    %p42 = scmp.eq.s32.totalorder %s22, 0
    %p43 = por %p41, %p42
    %p44 = scmp.ne.s32.totalorder %s30, %s31
    %p45 = scmp.eq.s32.totalorder %s23, 1
    %p46 = por %p44, %p45
    %p48 = scmp.ne.s32.totalorder %s31, %s47
    %p49 = scmp.eq.s32.totalorder %s23, 0
    %p50 = por %p48, %p49
    %s52 = sadd.s32 %s51, 1
    %p55 = scmp.eq.s32.totalorder %s17, 1
    %p56 = scmp.ne.s32.totalorder %s51, %s53
    %p57 = scmp.eq.s32.totalorder %s17, 0
    %p58 = por %p56, %p57
    %p59 = scmp.ne.s32.totalorder %s51, %s53
    %p60 = scmp.eq.s32.totalorder %s22, 1
    %p61 = por %p59, %p60
    %p62 = scmp.ne.s32.totalorder %s53, %s54
    %p63 = scmp.eq.s32.totalorder %s22, 0
    %p64 = por %p62, %p63
    %p65 = scmp.ne.s32.totalorder %s53, %s54
    %p66 = scmp.eq.s32.totalorder %s23, 1
    %p67 = por %p65, %p66
    %p69 = scmp.ne.s32.totalorder %s54, %s68
    %p70 = scmp.eq.s32.totalorder %s23, 0
    %p71 = por %p69, %p70
    %s73 = sadd.s32 %s72, 1
    %p76 = scmp.eq.s32.totalorder %s17, 1
    %p77 = scmp.ne.s32.totalorder %s72, %s74
    %p78 = scmp.eq.s32.totalorder %s17, 0
    %p79 = por %p77, %p78
    %p80 = scmp.ne.s32.totalorder %s72, %s74
    %p81 = scmp.eq.s32.totalorder %s22, 1
    %p82 = por %p80, %p81
    %p83 = scmp.ne.s32.totalorder %s74, %s75
    %p84 = scmp.eq.s32.totalorder %s22, 0
    %p85 = por %p83, %p84
    %p86 = scmp.ne.s32.totalorder %s74, %s75
    %p87 = scmp.eq.s32.totalorder %s23, 1
    %p88 = por %p86, %p87
    %p90 = scmp.ne.s32.totalorder %s75, %s89
    %p91 = scmp.eq.s32.totalorder %s23, 0
    %p92 = por %p90, %p91
    %s94 = sadd.s32 %s93, 1
    %p97 = scmp.eq.s32.totalorder %s17, 1
    %p98 = scmp.ne.s32.totalorder %s93, %s95
    %p99 = scmp.eq.s32.totalorder %s17, 0
    %p100 = por %p98, %p99
    %p101 = scmp.ne.s32.totalorder %s93, %s95
    %p102 = scmp.eq.s32.totalorder %s22, 1
    %p103 = por %p101, %p102
    %p104 = scmp.ne.s32.totalorder %s95, %s96
    %p105 = scmp.eq.s32.totalorder %s22, 0
    %p106 = por %p104, %p105
    %p107 = scmp.ne.s32.totalorder %s95, %s96
    %p108 = scmp.eq.s32.totalorder %s23, 1
    %p109 = por %p107, %p108
    %p111 = scmp.ne.s32.totalorder %s96, %s110
    %p112 = scmp.eq.s32.totalorder %s23, 0
    %p113 = por %p111, %p112
    %s115 = sadd.s32 %s114, 1
    %p118 = scmp.eq.s32.totalorder %s17, 1
    %p119 = scmp.ne.s32.totalorder %s114, %s116
    %p120 = scmp.eq.s32.totalorder %s17, 0
    %p121 = por %p119, %p120
    %p122 = scmp.ne.s32.totalorder %s114, %s116
    %p123 = scmp.eq.s32.totalorder %s22, 1
    %p124 = por %p122, %p123
    %p125 = scmp.ne.s32.totalorder %s116, %s117
    %p126 = scmp.eq.s32.totalorder %s22, 0
    %p127 = por %p125, %p126
    %p128 = scmp.ne.s32.totalorder %s116, %s117
    %p129 = scmp.eq.s32.totalorder %s23, 1
    %p130 = por %p128, %p129
    %p132 = scmp.ne.s32.totalorder %s117, %s131
    %p133 = scmp.eq.s32.totalorder %s23, 0
    %p134 = por %p132, %p133
    %s136 = sadd.s32 %s135, 1
    %p139 = scmp.eq.s32.totalorder %s17, 1
    %p140 = scmp.ne.s32.totalorder %s135, %s137
    %p141 = scmp.eq.s32.totalorder %s17, 0
    %p142 = por %p140, %p141
    %p143 = scmp.ne.s32.totalorder %s135, %s137
    %p144 = scmp.eq.s32.totalorder %s22, 1
    %p145 = por %p143, %p144
    %p146 = scmp.ne.s32.totalorder %s137, %s138
    %p147 = scmp.eq.s32.totalorder %s22, 0
    %p148 = por %p146, %p147
    %p149 = scmp.ne.s32.totalorder %s137, %s138
    %p150 = scmp.eq.s32.totalorder %s23, 1
    %p151 = por %p149, %p150
    %p153 = scmp.ne.s32.totalorder %s138, %s152
    %p154 = scmp.eq.s32.totalorder %s23, 0
    %p155 = por %p153, %p154
    %s157 = sadd.s32 %s156, 1
    %p160 = scmp.eq.s32.totalorder %s17, 1
    %p161 = scmp.ne.s32.totalorder %s156, %s158
    %p162 = scmp.eq.s32.totalorder %s17, 0
    %p163 = por %p161, %p162
    %p164 = scmp.ne.s32.totalorder %s156, %s158
    %p165 = scmp.eq.s32.totalorder %s22, 1
    %p166 = por %p164, %p165
    %p167 = scmp.ne.s32.totalorder %s158, %s159
    %p168 = scmp.eq.s32.totalorder %s22, 0
    %p169 = por %p167, %p168
    %p170 = scmp.ne.s32.totalorder %s158, %s159
    %p171 = scmp.eq.s32.totalorder %s23, 1
    %p172 = por %p170, %p171
    %p174 = scmp.ne.s32.totalorder %s159, %s173
    %p175 = scmp.eq.s32.totalorder %s23, 0
    %p176 = por %p174, %p175
    %s178 = sadd.s32 %s177, 1
    %p181 = scmp.eq.s32.totalorder %s17, 1
    %p182 = scmp.ne.s32.totalorder %s177, %s179
    %p183 = scmp.eq.s32.totalorder %s17, 0
    %p184 = por %p182, %p183
    %p185 = scmp.ne.s32.totalorder %s177, %s179
    %p186 = scmp.eq.s32.totalorder %s22, 1
    %p187 = por %p185, %p186
    %p188 = scmp.ne.s32.totalorder %s179, %s180
    %p189 = scmp.eq.s32.totalorder %s22, 0
    %p190 = por %p188, %p189
    %p191 = scmp.ne.s32.totalorder %s179, %s180
    %p192 = scmp.eq.s32.totalorder %s23, 1
    %p193 = por %p191, %p192
    %p195 = scmp.ne.s32.totalorder %s180, %s194
    %p196 = scmp.eq.s32.totalorder %s23, 0
    %p197 = por %p195, %p196
    %s199 = sadd.s32 %s198, 1
    %p202 = scmp.eq.s32.totalorder %s17, 1
    %p203 = scmp.ne.s32.totalorder %s198, %s200
    %p204 = scmp.eq.s32.totalorder %s17, 0
    %p205 = por %p203, %p204
    %p206 = scmp.ne.s32.totalorder %s198, %s200
    %p207 = scmp.eq.s32.totalorder %s22, 1
    %p208 = por %p206, %p207
    %p209 = scmp.ne.s32.totalorder %s200, %s201
    %p210 = scmp.eq.s32.totalorder %s22, 0
    %p211 = por %p209, %p210
    %p212 = scmp.ne.s32.totalorder %s200, %s201
    %p213 = scmp.eq.s32.totalorder %s23, 1
    %p214 = por %p212, %p213
    %p216 = scmp.ne.s32.totalorder %s201, %s215
    %p217 = scmp.eq.s32.totalorder %s23, 0
    %p218 = por %p216, %p217
    %s220 = sadd.s32 %s219, 1
    %p223 = scmp.eq.s32.totalorder %s17, 1
    %p224 = scmp.ne.s32.totalorder %s219, %s221
    %p225 = scmp.eq.s32.totalorder %s17, 0
    %p226 = por %p224, %p225
    %p227 = scmp.ne.s32.totalorder %s219, %s221
    %p228 = scmp.eq.s32.totalorder %s22, 1
    %p229 = por %p227, %p228
    %p230 = scmp.ne.s32.totalorder %s221, %s222
    %p231 = scmp.eq.s32.totalorder %s22, 0
    %p232 = por %p230, %p231
    %p233 = scmp.ne.s32.totalorder %s221, %s222
    %p234 = scmp.eq.s32.totalorder %s23, 1
    %p235 = por %p233, %p234
    %p237 = scmp.ne.s32.totalorder %s222, %s236
    %p238 = scmp.eq.s32.totalorder %s23, 0
    %p239 = por %p237, %p238
    %s241 = sadd.s32 %s240, 1
    %p244 = scmp.eq.s32.totalorder %s17, 1
    %p245 = scmp.ne.s32.totalorder %s240, %s242
    %p246 = scmp.eq.s32.totalorder %s17, 0
    %p247 = por %p245, %p246
    %p248 = scmp.ne.s32.totalorder %s240, %s242
    %p249 = scmp.eq.s32.totalorder %s22, 1
    %p250 = por %p248, %p249
    %p251 = scmp.ne.s32.totalorder %s242, %s243
    %p252 = scmp.eq.s32.totalorder %s22, 0
    %p253 = por %p251, %p252
    %p254 = scmp.ne.s32.totalorder %s242, %s243
    %p255 = scmp.eq.s32.totalorder %s23, 1
    %p256 = por %p254, %p255
    %p258 = scmp.ne.s32.totalorder %s243, %s257
    %p259 = scmp.eq.s32.totalorder %s23, 0
    %p260 = por %p258, %p259
    %s261 = ssub.s32 %s17, %s24
    %p262 = scmp.eq.s32.totalorder %s261, 0
    %s264 = sadd.s32 %s263, 1
    %s265 = scalar_select %p262, %s263, %s264
    %p268 = pneg %p262
    %p269 = scmp.eq.s32.totalorder %s17, 1
    %p270 = por %p268, %p269
    %p271 = scmp.ne.s32.totalorder %s263, %s266
    %p272 = scmp.eq.s32.totalorder %s17, 0
    %p273 = por %p271, %p272
    %p274 = scmp.ne.s32.totalorder %s263, %s266
    %p275 = scmp.eq.s32.totalorder %s22, 1
    %p276 = por %p274, %p275
    %p277 = scmp.ne.s32.totalorder %s266, %s267
    %p278 = scmp.eq.s32.totalorder %s22, 0
    %p279 = por %p277, %p278
    %p280 = scmp.ne.s32.totalorder %s266, %s267
    %p281 = scmp.eq.s32.totalorder %s23, 1
    %p282 = por %p280, %p281
    %p284 = scmp.ne.s32.totalorder %s267, %s283
    %p285 = scmp.eq.s32.totalorder %s23, 0
    %p286 = por %p284, %p285
    %p287 = scmp.le.s32.totalorder 1, %s17
    %p288 = scmp.lt.s32.totalorder %s17, 3
    %p289 = pnand %p287, %p288
    %p290 = pneg %p289
    // Predicated region
    $region9: #{transformer_classifier.5} parent=5 // pred_check
      _
    $region10: #{transformer_classifier.5} parent=5 // pred_check_branch
      %292 = sbr.rel (%p289) target = $region12
    $region11: #{transformer_classifier.5} parent=5 // pred_region
      %s293 = ssub.s32 %s17, 1
      // Predicated region
      $region13: #{transformer_classifier.5} parent=11 // pred_check
        %p294 = pneg %p64
      $region14: #{transformer_classifier.5} parent=11 // pred_check_branch
        %296 = sbr.rel (%p294) target = $region16
      $region15: #{transformer_classifier.5} parent=11 // pred_region
        _
      $region16: #{transformer_classifier.5} parent=11 // pred_fallthru
        _
      // Predicated region
      $region17: #{transformer_classifier.5} parent=11 // pred_check
        %p297 = pneg %p85
      $region18: #{transformer_classifier.5} parent=11 // pred_check_branch
        %299 = sbr.rel (%p297) target = $region20
      $region19: #{transformer_classifier.5} parent=11 // pred_region
        _
      $region20: #{transformer_classifier.5} parent=11 // pred_fallthru
        _
      // Predicated region
      $region21: #{transformer_classifier.5} parent=11 // pred_check
        %p300 = pneg %p106
      $region22: #{transformer_classifier.5} parent=11 // pred_check_branch
        %302 = sbr.rel (%p300) target = $region24
      $region23: #{transformer_classifier.5} parent=11 // pred_region
        _
      $region24: #{transformer_classifier.5} parent=11 // pred_fallthru
        _
      // Predicated region
      $region25: #{transformer_classifier.5} parent=11 // pred_check
        %p303 = pneg %p127
      $region26: #{transformer_classifier.5} parent=11 // pred_check_branch
        %305 = sbr.rel (%p303) target = $region28
      $region27: #{transformer_classifier.5} parent=11 // pred_region
        _
      $region28: #{transformer_classifier.5} parent=11 // pred_fallthru
        _
      // Predicated region
      $region29: #{transformer_classifier.5} parent=11 // pred_check
        %p306 = pneg %p148
      $region30: #{transformer_classifier.5} parent=11 // pred_check_branch
        %308 = sbr.rel (%p306) target = $region32
      $region31: #{transformer_classifier.5} parent=11 // pred_region
        _
      $region32: #{transformer_classifier.5} parent=11 // pred_fallthru
        _
      // Predicated region
      $region33: #{transformer_classifier.5} parent=11 // pred_check
        %p309 = pneg %p169
      $region34: #{transformer_classifier.5} parent=11 // pred_check_branch
        %311 = sbr.rel (%p309) target = $region36
      $region35: #{transformer_classifier.5} parent=11 // pred_region
        _
      $region36: #{transformer_classifier.5} parent=11 // pred_fallthru
        _
      // Predicated region
      $region37: #{transformer_classifier.5} parent=11 // pred_check
        %p312 = pneg %p190
      $region38: #{transformer_classifier.5} parent=11 // pred_check_branch
        %314 = sbr.rel (%p312) target = $region40
      $region39: #{transformer_classifier.5} parent=11 // pred_region
        _
      $region40: #{transformer_classifier.5} parent=11 // pred_fallthru
        _
      // Predicated region
      $region41: #{transformer_classifier.5} parent=11 // pred_check
        %p315 = pneg %p211
      $region42: #{transformer_classifier.5} parent=11 // pred_check_branch
        %317 = sbr.rel (%p315) target = $region44
      $region43: #{transformer_classifier.5} parent=11 // pred_region
        _
      $region44: #{transformer_classifier.5} parent=11 // pred_fallthru
        _
      // Predicated region
      $region45: #{transformer_classifier.5} parent=11 // pred_check
        %p318 = pneg %p232
      $region46: #{transformer_classifier.5} parent=11 // pred_check_branch
        %320 = sbr.rel (%p318) target = $region48
      $region47: #{transformer_classifier.5} parent=11 // pred_region
        _
      $region48: #{transformer_classifier.5} parent=11 // pred_fallthru
        _
      // Predicated region
      $region49: #{transformer_classifier.5} parent=11 // pred_check
        %p321 = pneg %p253
      $region50: #{transformer_classifier.5} parent=11 // pred_check_branch
        %323 = sbr.rel (%p321) target = $region52
      $region51: #{transformer_classifier.5} parent=11 // pred_region
        _
      $region52: #{transformer_classifier.5} parent=11 // pred_fallthru
        _
    $region12: #{transformer_classifier.5} parent=5 // pred_fallthru
      _
    %p324 = scmp.lt.s32.totalorder %s17, 2
    // Predicated region
    $region53: #{transformer_classifier.5} parent=5 // pred_check
      %p325 = pneg %p324
    $region54: #{transformer_classifier.5} parent=5 // pred_check_branch
      %327 = sbr.rel (%p325) target = $region56
    $region55: #{transformer_classifier.5} parent=5 // pred_region
      // Predicated region
      $region57: #{transformer_classifier.5} parent=55 // pred_check
        %p328 = pneg %p37
      $region58: #{transformer_classifier.5} parent=55 // pred_check_branch
        %330 = sbr.rel (%p328) target = $region60
      $region59: #{transformer_classifier.5} parent=55 // pred_region
        %p331 = scmp.lt.s32.totalorder %s17, 1
        %s332 = scalar_select %p331, %s17, 1
        %s333 = smul.addr %s332, 4
        %s334 = scalar_lea.vmem %s0, %s333
      $region60: #{transformer_classifier.5} parent=55 // pred_fallthru
        _
    $region56: #{transformer_classifier.5} parent=5 // pred_fallthru
      _
    %p335 = scmp.le.s32.totalorder 1, %s17
    %p336 = scmp.lt.s32.totalorder %s17, 3
    %p337 = pnand %p335, %p336
    %p338 = pneg %p337
    // Predicated region
    $region61: #{transformer_classifier.5} parent=5 // pred_check
      _
    $region62: #{transformer_classifier.5} parent=5 // pred_check_branch
      %340 = sbr.rel (%p337) target = $region64
    $region63: #{transformer_classifier.5} parent=5 // pred_region
      %s341 = ssub.s32 %s17, 1
      %p342 = scmp.lt.s32.totalorder %s22, 1
      %s343 = scalar_select %p342, %s22, 1
      %s344 = smul.addr %s343, 4
      %s345 = scalar_lea.vmem %s0, %s344
      %p346 = pneg %p43
      %p347 = pneg %p40
      %p348 = pneg %p64
      %p349 = pneg %p61
      %p350 = pneg %p85
      %p351 = pneg %p82
      %p352 = pneg %p106
      %p353 = pneg %p103
      %p354 = pneg %p127
      %p355 = pneg %p124
      %p356 = pneg %p148
      %p357 = pneg %p145
      %p358 = pneg %p169
      %p359 = pneg %p166
      %p360 = pneg %p190
      %p361 = pneg %p187
      %p362 = pneg %p211
      %p363 = pneg %p208
      %p364 = pneg %p232
      %p365 = pneg %p229
      %p366 = pneg %p253
      %p367 = pneg %p250
      %p368 = pneg %p279
      %p369 = pneg %p276
      %p370 = scmp.lt.s32.totalorder %s22, 1
      %s371 = scalar_select %p370, %s22, 1
      %s372 = smul.addr %s371, 4
      %s373 = scalar_lea.vmem %s11, %s372
      %p374 = scmp.lt.s32.totalorder %s22, 1
      %s375 = scalar_select %p374, %s22, 1
      %s376 = smul.addr %s375, 4
      %s377 = scalar_lea.vmem %s0, %s376
      %p378 = scmp.lt.s32.totalorder %s22, 1
      %s379 = scalar_select %p378, %s22, 1
      %s380 = smul.addr %s379, 4
      %s381 = scalar_lea.vmem %s11, %s380
      %v383 = vld [vmem:[%s377] sm:$0xf]
      loop: start=0, step=1, limit=4
      $region65: #{transformer_classifier.5} parent=63 // loop_pre_header
        _
      $region66: #{transformer_classifier.5} parent=63 // loop_header
        %s385 = sphi 0, %s389
        %p386 = scmp.ge.s32.totalorder %s385, 4
        %v390 = vphi 0.0, %v754
      $region67: #{transformer_classifier.5} parent=63 // loop_header_branch
        %388 = sbr.rel (%p386) target = $region71
      $region68: #{transformer_classifier.5} parent=63 // loop_body
        %s391 = smul.u32 %s385, 4
        %s392 = smul.addr %s391, 4
        %s393 = scalar_lea.vmem %s1, %s392
        %v394 = vld [vmem:[%s393] sm:$0xf]
        %v395 = vld [vmem:[%s393 + $0x4] sm:$0xf]
        %v396 = vld [vmem:[%s393 + $0x8] sm:$0xf]
        %v397 = vld [vmem:[%s393 + $0xc] sm:$0xf]
        %s398 = smul.addr %s391, 4
        %s399 = scalar_lea.vmem %s2, %s398
        %v400 = vld [vmem:[%s399] sm:$0xf]
        %v401 = vld [vmem:[%s399 + $0x4] sm:$0xf]
        %v402 = vld [vmem:[%s399 + $0x8] sm:$0xf]
        %v403 = vld [vmem:[%s399 + $0xc] sm:$0xf]
        %s404 = smul.addr %s391, 4
        %s405 = scalar_lea.vmem %s3, %s404
        %v406 = vld [vmem:[%s405] sm:$0xf]
        %v407 = vld [vmem:[%s405 + $0x4] sm:$0xf]
        %v408 = vld [vmem:[%s405 + $0x8] sm:$0xf]
        %v409 = vld [vmem:[%s405 + $0xc] sm:$0xf]
        %s410 = scalar_lea.vmem %s4, %s385
        %v411 = vld [vmem:[%s410] sm:$0x1]
        %v413 = vlaneseq
        %v414 = vshrl.u32 %v413, 7
        %v415 = vsub.s32 0, %v414
        %v416 = vrot.slane %v411, %v415
        %v422 = vunpack.c.l.b16 %v394
        %v423 = vunpack.c.l.b16 %v395
        %v424 = vunpack.c.l.b16 %v396
        %v425 = vunpack.c.l.b16 %v397
        %v426 = vpack.c.b16 %v423, %v422
        %v427 = vpack.c.b16 %v425, %v424
        %vm430 = vcmask 261120
        %v432 = vsel %vm430, %v383, 0
        %434 = vmatprep.subr.bf16.mxu0 0
        %435 = vmatpush1.bf16.msra.mxu0 %v426
        %436 = vmatprep.subr.bf16.mxu0 0
        %437 = vmatpush1.bf16.msra.mxu0 %v427
        %438 = vmatprep.subr.bf16.mxu0 0
        %439 = vmatpush1.bf16.msra.mxu0 0
        %440 = vmatprep.subr.bf16.mxu0 0
        %441 = vmatpush1.bf16.msra.mxu0 0
        %442 = vmatprep.subr.bf16.mxu0 0
        %443 = vmatpush1.bf16.msra.mxu0 0
        %444 = vmatprep.subr.bf16.mxu0 0
        %445 = vmatpush1.bf16.msra.mxu0 0
        %446 = vmatprep.subr.bf16.mxu0 0
        %447 = vmatpush1.bf16.msra.mxu0 0
        %448 = vmatprep.subr.bf16.mxu0 0
        %449 = vmatpush1.bf16.msra.mxu0 0
        %450 = vmatprep.subr.bf16.mxu0 0
        %451 = vmatpush1.bf16.msra.mxu0 0
        %452 = vmatprep.subr.bf16.mxu0 0
        %453 = vmatpush1.bf16.msra.mxu0 0
        %454 = vmatprep.subr.bf16.mxu0 0
        %455 = vmatpush1.bf16.msra.mxu0 0
        %456 = vmatprep.subr.bf16.mxu0 0
        %457 = vmatpush1.bf16.msra.mxu0 0
        %458 = vmatprep.subr.bf16.mxu0 0
        %459 = vmatpush1.bf16.msra.mxu0 0
        %460 = vmatprep.subr.bf16.mxu0 0
        %461 = vmatpush1.bf16.msra.mxu0 0
        %462 = vmatprep.subr.bf16.mxu0 0
        %463 = vmatpush1.bf16.msra.mxu0 0
        %464 = vmatprep.subr.bf16.mxu0 0
        %465 = vmatpush1.bf16.msra.mxu0 0
        %466 = vmatprep.mubr.bf16.mxu0 0
        %467 = vmatmul.mubr.bf16.gmra.mrb[0].mxu0 %v432
        %v468 = vpop.f32.mrb[0].mxu0
        %v469 = vadd.f32 %v416, %v468
        %v470 = vpop.f32.mrb[0].mxu0
        %v471 = vpop.f32.mrb[0].mxu0
        %v472 = vpop.f32.mrb[0].mxu0
        %473 = vdwg.mxu0
        %s474 = scalar_lea.vmem %s5, %s385
        %v475 = vld [vmem:[%s474] sm:$0x1]
        %v477 = vlaneseq
        %v478 = vshrl.u32 %v477, 7
        %v479 = vsub.s32 0, %v478
        %v480 = vrot.slane %v475, %v479
        %v486 = vunpack.c.l.b16 %v400
        %v487 = vunpack.c.l.b16 %v401
        %v488 = vunpack.c.l.b16 %v402
        %v489 = vunpack.c.l.b16 %v403
        %v490 = vpack.c.b16 %v487, %v486
        %v491 = vpack.c.b16 %v489, %v488
        %494 = vmatprep.subr.bf16.mxu0 0
        %495 = vmatpush1.bf16.msra.mxu0 %v490
        %496 = vmatprep.subr.bf16.mxu0 0
        %497 = vmatpush1.bf16.msra.mxu0 %v491
        %498 = vmatprep.subr.bf16.mxu0 0
        %499 = vmatpush1.bf16.msra.mxu0 0
        %500 = vmatprep.subr.bf16.mxu0 0
        %501 = vmatpush1.bf16.msra.mxu0 0
        %502 = vmatprep.subr.bf16.mxu0 0
        %503 = vmatpush1.bf16.msra.mxu0 0
        %504 = vmatprep.subr.bf16.mxu0 0
        %505 = vmatpush1.bf16.msra.mxu0 0
        %506 = vmatprep.subr.bf16.mxu0 0
        %507 = vmatpush1.bf16.msra.mxu0 0
        %508 = vmatprep.subr.bf16.mxu0 0
        %509 = vmatpush1.bf16.msra.mxu0 0
        %510 = vmatprep.subr.bf16.mxu0 0
        %511 = vmatpush1.bf16.msra.mxu0 0
        %512 = vmatprep.subr.bf16.mxu0 0
        %513 = vmatpush1.bf16.msra.mxu0 0
        %514 = vmatprep.subr.bf16.mxu0 0
        %515 = vmatpush1.bf16.msra.mxu0 0
        %516 = vmatprep.subr.bf16.mxu0 0
        %517 = vmatpush1.bf16.msra.mxu0 0
        %518 = vmatprep.subr.bf16.mxu0 0
        %519 = vmatpush1.bf16.msra.mxu0 0
        %520 = vmatprep.subr.bf16.mxu0 0
        %521 = vmatpush1.bf16.msra.mxu0 0
        %522 = vmatprep.subr.bf16.mxu0 0
        %523 = vmatpush1.bf16.msra.mxu0 0
        %524 = vmatprep.subr.bf16.mxu0 0
        %525 = vmatpush1.bf16.msra.mxu0 0
        %526 = vmatprep.mubr.bf16.mxu0 0
        %527 = vmatmul.mubr.bf16.gmra.mrb[0].mxu0 %v432
        %v528 = vpop.f32.mrb[0].mxu0
        %v529 = vadd.f32 %v480, %v528
        %v530 = vpop.f32.mrb[0].mxu0
        %v531 = vpop.f32.mrb[0].mxu0
        %v532 = vpop.f32.mrb[0].mxu0
        %533 = vdwg.mxu0
        %s534 = scalar_lea.vmem %s6, %s385
        %v535 = vld [vmem:[%s534] sm:$0x1]
        %v537 = vlaneseq
        %v538 = vshrl.u32 %v537, 7
        %v539 = vsub.s32 0, %v538
        %v540 = vrot.slane %v535, %v539
        %v546 = vunpack.c.l.b16 %v406
        %v547 = vunpack.c.l.b16 %v407
        %v548 = vunpack.c.l.b16 %v408
        %v549 = vunpack.c.l.b16 %v409
        %v550 = vpack.c.b16 %v547, %v546
        %v551 = vpack.c.b16 %v549, %v548
        %554 = vmatprep.subr.bf16.mxu0 0
        %555 = vmatpush1.bf16.msra.mxu0 %v550
        %556 = vmatprep.subr.bf16.mxu0 0
        %557 = vmatpush1.bf16.msra.mxu0 %v551
        %558 = vmatprep.subr.bf16.mxu0 0
        %559 = vmatpush1.bf16.msra.mxu0 0
        %560 = vmatprep.subr.bf16.mxu0 0
        %561 = vmatpush1.bf16.msra.mxu0 0
        %562 = vmatprep.subr.bf16.mxu0 0
        %563 = vmatpush1.bf16.msra.mxu0 0
        %564 = vmatprep.subr.bf16.mxu0 0
        %565 = vmatpush1.bf16.msra.mxu0 0
        %566 = vmatprep.subr.bf16.mxu0 0
        %567 = vmatpush1.bf16.msra.mxu0 0
        %568 = vmatprep.subr.bf16.mxu0 0
        %569 = vmatpush1.bf16.msra.mxu0 0
        %570 = vmatprep.subr.bf16.mxu0 0
        %571 = vmatpush1.bf16.msra.mxu0 0
        %572 = vmatprep.subr.bf16.mxu0 0
        %573 = vmatpush1.bf16.msra.mxu0 0
        %574 = vmatprep.subr.bf16.mxu0 0
        %575 = vmatpush1.bf16.msra.mxu0 0
        %576 = vmatprep.subr.bf16.mxu0 0
        %577 = vmatpush1.bf16.msra.mxu0 0
        %578 = vmatprep.subr.bf16.mxu0 0
        %579 = vmatpush1.bf16.msra.mxu0 0
        %580 = vmatprep.subr.bf16.mxu0 0
        %581 = vmatpush1.bf16.msra.mxu0 0
        %582 = vmatprep.subr.bf16.mxu0 0
        %583 = vmatpush1.bf16.msra.mxu0 0
        %584 = vmatprep.subr.bf16.mxu0 0
        %585 = vmatpush1.bf16.msra.mxu0 0
        %586 = vmatprep.mubr.bf16.mxu0 0
        %587 = vmatmul.mubr.bf16.gmra.mrb[0].mxu0 %v432
        %v588 = vpop.f32.mrb[0].mxu0
        %v589 = vadd.f32 %v540, %v588
        %v590 = vpop.f32.mrb[0].mxu0
        %v591 = vpop.f32.mrb[0].mxu0
        %v592 = vpop.f32.mrb[0].mxu0
        %593 = vdwg.mxu0
        %v594 = vmul.f32 %v469, 0.35355338
        %v595 = vpack.c.bf16 %v594, %v594
        %v596 = vpack.c.bf16 %v529, %v529
        %vm597 = vcmask 64512
        %v599 = vsel %vm597, %v595, 0
        %v602 = vsel %vm597, %v596, 0
        %604 = vmatprep.subr.bf16.mxu0 0
        %605 = vmatpush1.bf16.xpose.msra.mxu0 %v602
        %606 = vmatprep.subr.bf16.mxu0 0
        %607 = vmatpush1.bf16.xpose.msra.mxu0 0
        %608 = vmatprep.subr.bf16.mxu0 0
        %609 = vmatpush1.bf16.xpose.msra.mxu0 0
        %610 = vmatprep.subr.bf16.mxu0 0
        %611 = vmatpush1.bf16.xpose.msra.mxu0 0
        %612 = vmatprep.subr.bf16.mxu0 0
        %613 = vmatpush1.bf16.xpose.msra.mxu0 0
        %614 = vmatprep.subr.bf16.mxu0 0
        %615 = vmatpush1.bf16.xpose.msra.mxu0 0
        %616 = vmatprep.subr.bf16.mxu0 0
        %617 = vmatpush1.bf16.xpose.msra.mxu0 0
        %618 = vmatprep.subr.bf16.mxu0 0
        %619 = vmatpush1.bf16.xpose.msra.mxu0 0
        %620 = vmatprep.subr.bf16.mxu0 0
        %621 = vmatpush1.bf16.xpose.msra.mxu0 0
        %622 = vmatprep.subr.bf16.mxu0 0
        %623 = vmatpush1.bf16.xpose.msra.mxu0 0
        %624 = vmatprep.subr.bf16.mxu0 0
        %625 = vmatpush1.bf16.xpose.msra.mxu0 0
        %626 = vmatprep.subr.bf16.mxu0 0
        %627 = vmatpush1.bf16.xpose.msra.mxu0 0
        %628 = vmatprep.subr.bf16.mxu0 0
        %629 = vmatpush1.bf16.xpose.msra.mxu0 0
        %630 = vmatprep.subr.bf16.mxu0 0
        %631 = vmatpush1.bf16.xpose.msra.mxu0 0
        %632 = vmatprep.subr.bf16.mxu0 0
        %633 = vmatpush1.bf16.xpose.msra.mxu0 0
        %634 = vmatprep.subr.bf16.mxu0 0
        %635 = vmatpush1.bf16.xpose.msra.mxu0 0
        %636 = vmatprep.mubr.bf16.mxu0 0
        %637 = vmatmul.mubr.bf16.gmra.mrb[0].mxu0 %v599
        %v638 = vpop.f32.mrb[0].mxu0
        %v639 = vadd.f32 0.0, %v638
        %v640 = vpop.f32.mrb[0].mxu0
        %v641 = vpop.f32.mrb[0].mxu0
        %v642 = vpop.f32.mrb[0].mxu0
        %643 = vdwg.mxu0
        %v644 = vsel %vm597, %v639, -inf
        %645 = vmax.xlane.f32.xlu0 %v644
        %v646 = vpop.xlane.xlu0 %645
        %v647 = vsub.f32 %v639, %v646
        %v648 = vmul.f32 %v647, 1.442695
        %v649 = vpow.pop %v648
        %v650 = vsel %vm597, %v649, 0.0
        %651 = vadd.xlane.f32.xlu0 %v650
        %v652 = vpop.xlane.xlu0 %651
        %v653 = vrcp.pop %v652
        %v654 = vmul.f32 %v649, %v653
        %v655 = vpack.c.bf16 %v654, %v654
        %v656 = vpack.c.bf16 %v589, %v589
        %v658 = vsel %vm597, %v655, 0
        %vm660 = vcmask 1043456
        %v662 = vsel %vm660, %v656, 0
        %664 = vmatprep.subr.bf16.mxu0 0
        %665 = vmatpush1.bf16.msra.mxu0 %v662
        %666 = vmatprep.subr.bf16.mxu0 0
        %667 = vmatpush1.bf16.msra.mxu0 0
        %668 = vmatprep.subr.bf16.mxu0 0
        %669 = vmatpush1.bf16.msra.mxu0 0
        %670 = vmatprep.subr.bf16.mxu0 0
        %671 = vmatpush1.bf16.msra.mxu0 0
        %672 = vmatprep.subr.bf16.mxu0 0
        %673 = vmatpush1.bf16.msra.mxu0 0
        %674 = vmatprep.subr.bf16.mxu0 0
        %675 = vmatpush1.bf16.msra.mxu0 0
        %676 = vmatprep.subr.bf16.mxu0 0
        %677 = vmatpush1.bf16.msra.mxu0 0
        %678 = vmatprep.subr.bf16.mxu0 0
        %679 = vmatpush1.bf16.msra.mxu0 0
        %680 = vmatprep.subr.bf16.mxu0 0
        %681 = vmatpush1.bf16.msra.mxu0 0
        %682 = vmatprep.subr.bf16.mxu0 0
        %683 = vmatpush1.bf16.msra.mxu0 0
        %684 = vmatprep.subr.bf16.mxu0 0
        %685 = vmatpush1.bf16.msra.mxu0 0
        %686 = vmatprep.subr.bf16.mxu0 0
        %687 = vmatpush1.bf16.msra.mxu0 0
        %688 = vmatprep.subr.bf16.mxu0 0
        %689 = vmatpush1.bf16.msra.mxu0 0
        %690 = vmatprep.subr.bf16.mxu0 0
        %691 = vmatpush1.bf16.msra.mxu0 0
        %692 = vmatprep.subr.bf16.mxu0 0
        %693 = vmatpush1.bf16.msra.mxu0 0
        %694 = vmatprep.subr.bf16.mxu0 0
        %695 = vmatpush1.bf16.msra.mxu0 0
        %696 = vmatprep.mubr.bf16.mxu0 0
        %697 = vmatmul.mubr.bf16.gmra.mrb[0].mxu0 %v658
        %v698 = vpop.f32.mrb[0].mxu0
        %v699 = vadd.f32 0.0, %v698
        %v700 = vpop.f32.mrb[0].mxu0
        %v701 = vpop.f32.mrb[0].mxu0
        %v702 = vpop.f32.mrb[0].mxu0
        %703 = vdwg.mxu0
        %v704 = vpack.c.bf16 %v699, %v699
        %s705 = smul.addr %s385, 4
        %s706 = scalar_lea.vmem %s7, %s705
        %v707 = vld [vmem:[%s706] sm:$0xf]
        %v709 = vsel %vm597, %v704, 0
        %v712 = vsel %vm660, %v707, 0
        %714 = vmatprep.subr.bf16.mxu0 0
        %715 = vmatpush1.bf16.msra.mxu0 %v712
        %716 = vmatprep.subr.bf16.mxu0 0
        %717 = vmatpush1.bf16.msra.mxu0 0
        %718 = vmatprep.subr.bf16.mxu0 0
        %719 = vmatpush1.bf16.msra.mxu0 0
        %720 = vmatprep.subr.bf16.mxu0 0
        %721 = vmatpush1.bf16.msra.mxu0 0
        %722 = vmatprep.subr.bf16.mxu0 0
        %723 = vmatpush1.bf16.msra.mxu0 0
        %724 = vmatprep.subr.bf16.mxu0 0
        %725 = vmatpush1.bf16.msra.mxu0 0
        %726 = vmatprep.subr.bf16.mxu0 0
        %727 = vmatpush1.bf16.msra.mxu0 0
        %728 = vmatprep.subr.bf16.mxu0 0
        %729 = vmatpush1.bf16.msra.mxu0 0
        %730 = vmatprep.subr.bf16.mxu0 0
        %731 = vmatpush1.bf16.msra.mxu0 0
        %732 = vmatprep.subr.bf16.mxu0 0
        %733 = vmatpush1.bf16.msra.mxu0 0
        %734 = vmatprep.subr.bf16.mxu0 0
        %735 = vmatpush1.bf16.msra.mxu0 0
        %736 = vmatprep.subr.bf16.mxu0 0
        %737 = vmatpush1.bf16.msra.mxu0 0
        %738 = vmatprep.subr.bf16.mxu0 0
        %739 = vmatpush1.bf16.msra.mxu0 0
        %740 = vmatprep.subr.bf16.mxu0 0
        %741 = vmatpush1.bf16.msra.mxu0 0
        %742 = vmatprep.subr.bf16.mxu0 0
        %743 = vmatpush1.bf16.msra.mxu0 0
        %744 = vmatprep.subr.bf16.mxu0 0
        %745 = vmatpush1.bf16.msra.mxu0 0
        %746 = vmatprep.mubr.bf16.mxu0 0
        %747 = vmatmul.mubr.bf16.gmra.mrb[0].mxu0 %v709
        %v748 = vpop.f32.mrb[0].mxu0
        %v749 = vadd.f32 0.0, %v748
        %v750 = vpop.f32.mrb[0].mxu0
        %v751 = vpop.f32.mrb[0].mxu0
        %v752 = vpop.f32.mrb[0].mxu0
        %753 = vdwg.mxu0
        %v754 = vadd.f32 %v390, %v749
      $region69: #{transformer_classifier.5} parent=63 // loop_footer
        %s389 = sadd.s32 1, %s385
      $region70: #{transformer_classifier.5} parent=63 // loop_footer_branch
        %384 = sbr.rel target = $region66
      $region71: #{transformer_classifier.5} parent=63 // loop_exit
        _
      %v755 = vunpack.c.l.bf16 %v383
      %v756 = vadd.f32 %v755, %v390
      %v757 = vld [vmem:[%s8] sm:$0x1]
      %v759 = vlaneseq
      %v760 = vshrl.u32 %v759, 7
      %v761 = vsub.s32 0, %v760
      %v762 = vrot.slane %v757, %v761
      %v764 = vadd.f32 %v756, %v762
      %vm765 = vcmask 261120
      %v766 = vsel %vm765, %v764, 0.0
      %767 = vadd.xlane.f32.xlu0 %v766
      %v768 = vpop.xlane.xlu0 %767
      %v769 = vrcp.pop 32.0
      %v770 = vmul.f32 %v768, %v769
      %v771 = vsub.f32 %v764, %v770
      %v772 = vmul.f32 %v771, %v771
      %v773 = vsel %vm765, %v772, 0.0
      %774 = vadd.xlane.f32.xlu0 %v773
      %v775 = vpop.xlane.xlu0 %774
      %v776 = vmul.f32 %v775, %v769
      %v777 = vadd.f32 %v776, 1e-05
      %v778 = vrsqrt.pop %v777
      %v779 = vmul.f32 %v771, %v778
      %v780 = vld [vmem:[%s9] sm:$0x1]
      %v782 = vlaneseq
      %v783 = vshrl.u32 %v782, 7
      %v784 = vsub.s32 0, %v783
      %v785 = vrot.slane %v780, %v784
      %v787 = vmul.f32 %v779, %v785
      %v788 = vld [vmem:[%s10] sm:$0x1]
      %v790 = vlaneseq
      %v791 = vshrl.u32 %v790, 7
      %v792 = vsub.s32 0, %v791
      %v793 = vrot.slane %v788, %v792
      %v795 = vadd.f32 %v787, %v793
      %v796 = vpack.c.bf16 %v795, %v795
      %vm797 = vcmask 257024
      %798 = vst.msk [vmem:[%s381] sm:$0xf] %vm797, %v796
      %p799 = scmp.lt.s32.totalorder %s22, 1
      %s800 = scalar_select %p799, %s22, 1
      %s801 = smul.addr %s800, 4
      %s802 = scalar_lea.vmem %s11, %s801
      // Predicated region
      $region72: #{transformer_classifier.5} parent=63 // pred_check
        %p803 = pneg %p276
      $region73: #{transformer_classifier.5} parent=63 // pred_check_branch
        %805 = sbr.rel (%p803) target = $region75
      $region74: #{transformer_classifier.5} parent=63 // pred_region
        _
      $region75: #{transformer_classifier.5} parent=63 // pred_fallthru
        _
    $region64: #{transformer_classifier.5} parent=5 // pred_fallthru
      _
    %p806 = scmp.le.s32.totalorder 2, %s17
    // Predicated region
    $region76: #{transformer_classifier.5} parent=5 // pred_check
      %p807 = pneg %p806
    $region77: #{transformer_classifier.5} parent=5 // pred_check_branch
      %809 = sbr.rel (%p807) target = $region79
    $region78: #{transformer_classifier.5} parent=5 // pred_region
      %s810 = ssub.s32 %s17, 2
      // Predicated region
      $region80: #{transformer_classifier.5} parent=78 // pred_check
        %p811 = pneg %p282
      $region81: #{transformer_classifier.5} parent=78 // pred_check_branch
        %813 = sbr.rel (%p811) target = $region83
      $region82: #{transformer_classifier.5} parent=78 // pred_region
        %p814 = scmp.lt.s32.totalorder %s23, 1
        %s815 = scalar_select %p814, %s23, 1
        %s816 = smul.addr %s815, 4
        %s817 = scalar_lea.vmem %s11, %s816
      $region83: #{transformer_classifier.5} parent=78 // pred_fallthru
        _
    $region79: #{transformer_classifier.5} parent=5 // pred_fallthru
      _
  $region6: #{transformer_classifier.5} parent=0 // loop_footer
    %s21 = sadd.s32 1, %s17
  $region7: #{transformer_classifier.5} parent=0 // loop_footer_branch
    %16 = sbr.rel target = $region3
  $region8: #{transformer_classifier.5} parent=0 // loop_exit
    _

</llo_original>
